<compile_context>
chip_gen: v6e
topology: v6e:2x2x1
jax: 0.10.0
libtpu: 0.0.40
codegen_flags: <defaults>
</compile_context>

<pallas_src>
import jax
import jax.numpy as jnp
from jax.experimental import pallas as pl
from jax.experimental.pallas import tpu as pltpu


def _add_conv1x1_kernel(a_ref, b_ref, w_ref, o_ref):
    # a_ref, b_ref: (C_in, M) resident in VMEM across all grid steps
    # w_ref: (TILE_CO, C_in)   o_ref: (TILE_CO, M)
    x = a_ref[...] + b_ref[...]
    o_ref[...] = jnp.dot(
        w_ref[...], x, preferred_element_type=jnp.float32
    ).astype(o_ref.dtype)


def _target_grid_steps():
    """Generation-conditional step count (all differences are sub-microsecond)."""
    try:
        kind = jax.devices()[0].device_kind.lower()
    except Exception:
        return 2
    if "v5 lite" in kind or "v5e" in kind or "v5lite" in kind:
        # Low HBM BW: keep a few pipelined steps so output writeback overlaps.
        return 3
    # v7x: 2 "parallel" steps -> one per TensorCore. v6e: 2 big steps ~ single tile.
    return 2


def _pick_cout_tile(c_out, target_steps):
    """Largest step count <= target such that the C_out block is sublane-aligned."""
    for t in range(target_steps, 0, -1):
        if c_out % t == 0 and (t == 1 or (c_out // t) % 8 == 0):
            return c_out // t
    return c_out  # single full block (always legal: block dim == full dim)


def add_conv1x1(x38, x29, weight):
    """x38, x29: NCHW float32 (N, C_in, H, W). weight: (C_out, C_in, 1, 1).
    Returns NCHW (N, C_out, H, W)."""
    N, C_in, H, W = x38.shape
    C_out = weight.shape[0]
    M = N * H * W

    # NCHW -> (C_in, M). Pure reshape when N == 1 (the module's case).
    if N == 1:
        a = x38.reshape(C_in, M)
        b = x29.reshape(C_in, M)
    else:
        # TODO(synk): for N>1 a squeezed batch grid axis would avoid these copies.
        a = jnp.transpose(x38, (1, 0, 2, 3)).reshape(C_in, M)
        b = jnp.transpose(x29, (1, 0, 2, 3)).reshape(C_in, M)
    w = weight.reshape(C_out, C_in)

    tile_co = _pick_cout_tile(C_out, _target_grid_steps())
    num_steps = C_out // tile_co

    cost = pl.CostEstimate(
        flops=2 * C_out * C_in * M + C_in * M,
        bytes_accessed=4 * (2 * C_in * M + C_out * C_in + C_out * M),
        transcendentals=0,
    )

    out_mat = pl.pallas_call(
        _add_conv1x1_kernel,
        out_shape=jax.ShapeDtypeStruct((C_out, M), x38.dtype),
        grid=(num_steps,),
        in_specs=[
            # Inputs: constant block index -> fetched once, resident in VMEM.
            pl.BlockSpec((C_in, M), lambda i: (0, 0)),
            pl.BlockSpec((C_in, M), lambda i: (0, 0)),
            # Weight slab for this output-row block (~7 KiB).
            pl.BlockSpec((tile_co, C_in), lambda i: (i, 0)),
        ],
        # Full-M lanes -> unmasked vst; tile_co rows per step stream back to HBM.
        out_specs=pl.BlockSpec((tile_co, M), lambda i: (i, 0)),
        compiler_params=pltpu.CompilerParams(
            dimension_semantics=("parallel",),
        ),
        cost_estimate=cost,
    )(a, b, w)

    # (C_out, M) -> NCHW
    if N == 1:
        return out_mat.reshape(1, C_out, H, W)
    return jnp.transpose(out_mat.reshape(C_out, N, H, W), (1, 0, 2, 3))


if __name__ == "__main__":
    key = jax.random.PRNGKey(0)
    k1, k2, k3 = jax.random.split(key, 3)

    # Shapes from the module spec: inputs (1, 24, 56, 56), Conv2d(24 -> 144, 1x1).
    N, C_in, H, W = 1, 24, 56, 56
    C_out = 144

    x38 = jax.random.normal(k1, (N, C_in, H, W), dtype=jnp.float32)
    x29 = jax.random.normal(k2, (N, C_in, H, W), dtype=jnp.float32)
    # Deterministic Conv2d weight (kaiming-ish scale), shape (C_out, C_in, 1, 1).
    weight = jax.random.normal(k3, (C_out, C_in, 1, 1), dtype=jnp.float32) * (
        1.0 / jnp.sqrt(C_in)
    )

    out = add_conv1x1(x38, x29, weight)
    jax.block_until_ready(out)

    # Reference: 1x1 conv == einsum over the channel axis.
    ref = jnp.einsum("nchw,oc->nohw", x38 + x29, weight.reshape(C_out, C_in))
    assert out.shape == (N, C_out, H, W)
    assert jnp.allclose(out, ref, atol=1e-4, rtol=1e-4)

    print("KERNEL_OK")
</pallas_src>

<mosaic_0001>
module attributes {stable_mosaic.version = 11 : i64} {
  func.func @_add_conv1x1_kernel(%arg0: i32, %arg1: memref<24x3136xf32, #tpu.memory_space<vmem>>, %arg2: memref<24x3136xf32, #tpu.memory_space<vmem>>, %arg3: memref<72x24xf32, #tpu.memory_space<vmem>>, %arg4: memref<72x3136xf32, #tpu.memory_space<vmem>>) attributes {dimension_semantics = [#tpu.dimension_semantics<parallel>], iteration_bounds = array<i64: 2>, scalar_prefetch = 0 : i64, scratch_operands = 0 : i64, tpu.core_type = #tpu.core_type<tc>, window_params = [{pipeline_mode = #tpu.pipeline_mode<synchronous>, transform_indices = @transform_0, window_bounds = array<i64: 24, 3136>}, {pipeline_mode = #tpu.pipeline_mode<synchronous>, transform_indices = @transform_1, window_bounds = array<i64: 24, 3136>}, {transform_indices = @transform_2, window_bounds = array<i64: 72, 24>}, {transform_indices = @transform_3, window_bounds = array<i64: 72, 3136>}]} {
    %c0 = arith.constant 0 : index
    %c0_0 = arith.constant 0 : index
    %0 = vector.load %arg1[%c0, %c0_0] : memref<24x3136xf32, #tpu.memory_space<vmem>>, vector<24x3136xf32>
    %c0_1 = arith.constant 0 : index
    %c0_2 = arith.constant 0 : index
    %1 = vector.load %arg2[%c0_1, %c0_2] : memref<24x3136xf32, #tpu.memory_space<vmem>>, vector<24x3136xf32>
    %2 = arith.addf %0, %1 : vector<24x3136xf32>
    %c0_3 = arith.constant 0 : index
    %c0_4 = arith.constant 0 : index
    %3 = vector.load %arg3[%c0_3, %c0_4] : memref<72x24xf32, #tpu.memory_space<vmem>>, vector<72x24xf32>
    %cst = arith.constant dense<0.000000e+00> : vector<72x3136xf32>
    %4 = tpu.matmul %3, %2, %cst {dimension_numbers = #tpu.dot_dimension_numbers<[1], [0], [0], [1], [0, 0, 1, 1], [], []>} : vector<72x24xf32>, vector<24x3136xf32>, vector<72x3136xf32> -> vector<72x3136xf32>
    %c0_5 = arith.constant 0 : index
    %c0_6 = arith.constant 0 : index
    %5 = vector.load %arg4[%c0_5, %c0_6] : memref<72x3136xf32, #tpu.memory_space<vmem>>, vector<72x3136xf32>
    tpu.vector_store %arg4[%c0_5, %c0_6], %4 {strides = array<i32>} : memref<72x3136xf32, #tpu.memory_space<vmem>>, vector<72x3136xf32>,
    return
  }
  func.func @transform_0(%arg0: i32) -> (i32, i32) {
    %c0_i32 = arith.constant 0 : i32
    %c0_i32_0 = arith.constant 0 : i32
    %c0_i32_1 = arith.constant 0 : i32
    return %c0_i32, %c0_i32_0 : i32, i32
  }
  func.func @transform_1(%arg0: i32) -> (i32, i32) {
    %c0_i32 = arith.constant 0 : i32
    %c0_i32_0 = arith.constant 0 : i32
    %c0_i32_1 = arith.constant 0 : i32
    return %c0_i32, %c0_i32_0 : i32, i32
  }
  func.func @transform_2(%arg0: i32) -> (i32, i32) {
    %c0_i32 = arith.constant 0 : i32
    %c0_i32_0 = arith.constant 0 : i32
    return %arg0, %c0_i32 : i32, i32
  }
  func.func @transform_3(%arg0: i32) -> (i32, i32) {
    %c0_i32 = arith.constant 0 : i32
    %c0_i32_0 = arith.constant 0 : i32
    return %arg0, %c0_i32 : i32, i32
  }
}

</mosaic_0001>

<llo_original>
// kernel: tpu_custom_call.1
$region0: #{tpu_custom_call.1}
  #allocation0 [shape = 'u32[]', space=smem, size = 0x4, offset = 0x4, fixed_abs, tag = 'smem constant byte address 0x4 - core index']
  #allocation1 [shape = 'u32[144,128]{1,0:T(1,128)}', space=vmem, size = 0x12000, scoped, tag = 'internal scratch']
  %s0 = inlined_call_operand.hbm [shape: f32[24,3136], index: 0, kind: input, shape index: {}]
  %s1 = inlined_call_operand.hbm [shape: f32[24,3136], index: 1, kind: input, shape index: {}]
  %s2 = inlined_call_operand.vmem [shape: f32[144,24], index: 2, kind: input, shape index: {}]
  %s3 = inlined_call_operand.hbm [shape: f32[144,3136], index: 3, kind: output, shape index: {}]
  %s4 = sld [smem:[#allocation0]]
  $region53: #{tpu_custom_call.1} parent=0
    _
  %s6 = ssub.s32 1, %s4
  %s7 = scalar_select 0, %s6, %s4
  $region1: #{tpu_custom_call.1} parent=0
    #allocation2 [shape = 'u8[307200]{0}', space=vmem, size = 0x4b000, scoped, tag = 'input window, operand 0, single buffered']
    #allocation3 [shape = 's32[2]{0}', space=sflag, size = 0x8, scoped, tag = 'scoped memory for tpu_custom_call.1']
    #allocation4 [shape = 's32[2]{0}', space=sflag, size = 0x8, scoped, tag = 'scoped memory for tpu_custom_call.1']
    #allocation5 [shape = 'u8[307200]{0}', space=vmem, size = 0x4b000, scoped, tag = 'input window, operand 1, single buffered']
    #allocation6 [shape = 's32[1]{0}', space=sflag, size = 0x4, scoped, tag = 'scoped memory for tpu_custom_call.1']
    #allocation7 [shape = 'u8[1843200]{0}', space=vmem, size = 0x1c2000, scoped, tag = 'output window, operand 0']
    %8 = vsyncpa [#allocation3], 0
    %9 = vsyncpa [#allocation6], 0
    %10 = vsyncpa [#allocation4], 0
    %s11 = scalar_lea.sflag [#allocation4], 1
    %12 = vsyncpa %s11, 0
    loop: start=0, step=1, limit=4
    $region2: #{tpu_custom_call.1} parent=1 // loop_pre_header
      _
    $region3: #{tpu_custom_call.1} parent=1 // loop_header
      %s14 = sphi 0, %s18
      %p15 = scmp.ge.s32.totalorder %s14, 4
      %s22 = sphi 0, %s22
      %s24 = sphi 0, %s22
      %s25 = sphi 0, %s24
      %s39 = sphi 0, %s25
      %s43 = sphi 0, %s43
      %s45 = sphi 0, %s43
      %s46 = sphi 0, %s45
      %s60 = sphi 0, %s46
      %s66 = sphi 0, %s68
      %s69 = sphi 0, %s66
      %s70 = sphi 0, %s69
      %s86 = sphi 0, %s70
      %s92 = sphi 0, %s94
      %s95 = sphi 0, %s92
      %s96 = sphi 0, %s95
      %s112 = sphi 0, %s96
    $region4: #{tpu_custom_call.1} parent=1 // loop_header_branch
      %17 = sbr.rel (%p15) target = $region8
    $region5: #{tpu_custom_call.1} parent=1 // loop_body
      %s19 = ssub.s32 %s14, 1
      %s20 = ssub.s32 %s14, 2
      %s21 = sadd.s32 %s14, 1
      %s23 = sadd.s32 %s22, 1
      %p26 = scmp.eq.s32.totalorder %s14, 1
      %p27 = scmp.ne.s32.totalorder %s22, %s24
      %p28 = scmp.eq.s32.totalorder %s14, 0
      %p29 = por %p27, %p28
      %p30 = scmp.ne.s32.totalorder %s22, %s24
      %p31 = scmp.eq.s32.totalorder %s19, 1
      %p32 = por %p30, %p31
      %p33 = scmp.ne.s32.totalorder %s24, %s25
      %p34 = scmp.eq.s32.totalorder %s19, 0
      %p35 = por %p33, %p34
      %p36 = scmp.ne.s32.totalorder %s24, %s25
      %p37 = scmp.eq.s32.totalorder %s20, 1
      %p38 = por %p36, %p37
      %p40 = scmp.ne.s32.totalorder %s25, %s39
      %p41 = scmp.eq.s32.totalorder %s20, 0
      %p42 = por %p40, %p41
      %s44 = sadd.s32 %s43, 1
      %p47 = scmp.eq.s32.totalorder %s14, 1
      %p48 = scmp.ne.s32.totalorder %s43, %s45
      %p49 = scmp.eq.s32.totalorder %s14, 0
      %p50 = por %p48, %p49
      %p51 = scmp.ne.s32.totalorder %s43, %s45
      %p52 = scmp.eq.s32.totalorder %s19, 1
      %p53 = por %p51, %p52
      %p54 = scmp.ne.s32.totalorder %s45, %s46
      %p55 = scmp.eq.s32.totalorder %s19, 0
      %p56 = por %p54, %p55
      %p57 = scmp.ne.s32.totalorder %s45, %s46
      %p58 = scmp.eq.s32.totalorder %s20, 1
      %p59 = por %p57, %p58
      %p61 = scmp.ne.s32.totalorder %s46, %s60
      %p62 = scmp.eq.s32.totalorder %s20, 0
      %p63 = por %p61, %p62
      %s64 = ssub.s32 %s14, %s21
      %p65 = scmp.eq.s32.totalorder %s64, 0
      %s67 = sadd.s32 %s66, 1
      %s68 = scalar_select %p65, %s66, %s67
      %p71 = pneg %p65
      %p72 = scmp.eq.s32.totalorder %s14, 1
      %p73 = por %p71, %p72
      %p74 = scmp.ne.s32.totalorder %s66, %s69
      %p75 = scmp.eq.s32.totalorder %s14, 0
      %p76 = por %p74, %p75
      %p77 = scmp.ne.s32.totalorder %s66, %s69
      %p78 = scmp.eq.s32.totalorder %s19, 1
      %p79 = por %p77, %p78
      %p80 = scmp.ne.s32.totalorder %s69, %s70
      %p81 = scmp.eq.s32.totalorder %s19, 0
      %p82 = por %p80, %p81
      %p83 = scmp.ne.s32.totalorder %s69, %s70
      %p84 = scmp.eq.s32.totalorder %s20, 1
      %p85 = por %p83, %p84
      %p87 = scmp.ne.s32.totalorder %s70, %s86
      %p88 = scmp.eq.s32.totalorder %s20, 0
      %p89 = por %p87, %p88
      %s90 = ssub.s32 %s14, %s21
      %p91 = scmp.eq.s32.totalorder %s90, 0
      %s93 = sadd.s32 %s92, 1
      %s94 = scalar_select %p91, %s92, %s93
      %p97 = pneg %p91
      %p98 = scmp.eq.s32.totalorder %s14, 1
      %p99 = por %p97, %p98
      %p100 = scmp.ne.s32.totalorder %s92, %s95
      %p101 = scmp.eq.s32.totalorder %s14, 0
      %p102 = por %p100, %p101
      %p103 = scmp.ne.s32.totalorder %s92, %s95
      %p104 = scmp.eq.s32.totalorder %s19, 1
      %p105 = por %p103, %p104
      %p106 = scmp.ne.s32.totalorder %s95, %s96
      %p107 = scmp.eq.s32.totalorder %s19, 0
      %p108 = por %p106, %p107
      %p109 = scmp.ne.s32.totalorder %s95, %s96
      %p110 = scmp.eq.s32.totalorder %s20, 1
      %p111 = por %p109, %p110
      %p113 = scmp.ne.s32.totalorder %s96, %s112
      %p114 = scmp.eq.s32.totalorder %s20, 0
      %p115 = por %p113, %p114
      %p116 = scmp.le.s32.totalorder 1, %s14
      %p117 = scmp.lt.s32.totalorder %s14, 3
      %p118 = pnand %p116, %p117
      %p119 = pneg %p118
      // Predicated region
      $region9: #{tpu_custom_call.1} parent=5 // pred_check
        _
      $region10: #{tpu_custom_call.1} parent=5 // pred_check_branch
        %121 = sbr.rel (%p118) target = $region12
      $region11: #{tpu_custom_call.1} parent=5 // pred_region
        %s122 = ssub.s32 %s14, 1
        // Predicated region
        $region13: #{tpu_custom_call.1} parent=11 // pred_check
          %p123 = pneg %p35
        $region14: #{tpu_custom_call.1} parent=11 // pred_check_branch
          %125 = sbr.rel (%p123) target = $region16
        $region15: #{tpu_custom_call.1} parent=11 // pred_region
          %s127 = ssub.s32 9600, 9600
          %128 = vsyncadd [#allocation3], %s127
          %s129 = sshll.u32 [#allocation2], 4
          %s130 = int_to_ptr.vmem [resolvable:$true] %s129
          %135 = dma.hbm_to_vmem [thread:$0]  %s0, 9600, %s130, [#allocation3], 3200, 3200, 200
        $region16: #{tpu_custom_call.1} parent=11 // pred_fallthru
          _
        // Predicated region
        $region17: #{tpu_custom_call.1} parent=11 // pred_check
          %p136 = pneg %p56
        $region18: #{tpu_custom_call.1} parent=11 // pred_check_branch
          %138 = sbr.rel (%p136) target = $region20
        $region19: #{tpu_custom_call.1} parent=11 // pred_region
          %s140 = ssub.s32 9600, 9600
          %141 = vsyncadd [#allocation6], %s140
          %s142 = sshll.u32 [#allocation5], 4
          %s143 = int_to_ptr.vmem [resolvable:$true] %s142
          %148 = dma.hbm_to_vmem [thread:$0]  %s1, 9600, %s143, [#allocation6], 3200, 3200, 200
        $region20: #{tpu_custom_call.1} parent=11 // pred_fallthru
          _
      $region12: #{tpu_custom_call.1} parent=5 // pred_fallthru
        _
      %p149 = scmp.lt.s32.totalorder %s14, 2
      // Predicated region
      $region21: #{tpu_custom_call.1} parent=5 // pred_check
        %p150 = pneg %p149
      $region22: #{tpu_custom_call.1} parent=5 // pred_check_branch
        %152 = sbr.rel (%p150) target = $region24
      $region23: #{tpu_custom_call.1} parent=5 // pred_region
        // Predicated region
        $region25: #{tpu_custom_call.1} parent=23 // pred_check
          %p153 = pneg %p76
        $region26: #{tpu_custom_call.1} parent=23 // pred_check_branch
          %155 = sbr.rel (%p153) target = $region28
        $region27: #{tpu_custom_call.1} parent=23 // pred_region
          %s156 = smul.u32 9, %s14
          %p157 = scmp.lt.s32.totalorder %s156, 17
          %s158 = scalar_select %p157, %s156, 17
          %s159 = smul.addr %s158, 8
          %s160 = scalar_lea.vmem %s2, %s159
          %s161 = smul.u32 9, %s14
        $region28: #{tpu_custom_call.1} parent=23 // pred_fallthru
          _
      $region24: #{tpu_custom_call.1} parent=5 // pred_fallthru
        _
      %p162 = scmp.le.s32.totalorder 1, %s14
      %p163 = scmp.lt.s32.totalorder %s14, 3
      %p164 = pnand %p162, %p163
      %p165 = pneg %p164
      // Predicated region
      $region29: #{tpu_custom_call.1} parent=5 // pred_check
        _
      $region30: #{tpu_custom_call.1} parent=5 // pred_check_branch
        %167 = sbr.rel (%p164) target = $region32
      $region31: #{tpu_custom_call.1} parent=5 // pred_region
        %s168 = ssub.s32 %s14, 1
        // Predicated region
        $region33: #{tpu_custom_call.1} parent=31 // pred_check
          %p169 = pneg %p35
        $region34: #{tpu_custom_call.1} parent=31 // pred_check_branch
          %171 = sbr.rel (%p169) target = $region36
        $region35: #{tpu_custom_call.1} parent=31 // pred_region
          %172 = dma.done [#allocation3], 9600
        $region36: #{tpu_custom_call.1} parent=31 // pred_fallthru
          _
        // Predicated region
        $region37: #{tpu_custom_call.1} parent=31 // pred_check
          %p173 = pneg %p56
        $region38: #{tpu_custom_call.1} parent=31 // pred_check_branch
          %175 = sbr.rel (%p173) target = $region40
        $region39: #{tpu_custom_call.1} parent=31 // pred_region
          %176 = dma.done [#allocation6], 9600
        $region40: #{tpu_custom_call.1} parent=31 // pred_fallthru
          _
        %p177 = pneg %p35
        %p178 = pneg %p32
        %p179 = pneg %p56
        %p180 = pneg %p53
        %s181 = smul.u32 9, %s19
        %p182 = scmp.lt.s32.totalorder %s181, 17
        %s183 = scalar_select %p182, %s181, 17
        %s184 = smul.addr %s183, 8
        %s185 = scalar_lea.vmem %s2, %s184
        %p186 = pneg %p82
        %p187 = pneg %p79
        %p188 = pneg %p108
        %p189 = pneg %p105
        %s190 = sand.u32 %s95, 1
        %s191 = scalar_lea.sflag [#allocation4], %s190
        %s192 = sand.u32 %s95, 1
        %s193 = smul.addr %s192, 1800
        %s194 = scalar_lea.vmem [#allocation7], %s193
        %s195 = smul.u32 9, %s19
        %p196 = scmp.lt.s32.totalorder %s195, 17
        %s197 = scalar_select %p196, %s195, 17
        %s198 = smul.addr %s197, 8
        %s199 = scalar_lea.vmem %s2, %s198
        %s200 = smul.u32 9, %s19
        %s201 = smul.u32 9, %s19
        %v202 = vld [vmem:[#allocation2] sm:$0xff]
        %v203 = vld [vmem:[#allocation2 + $0x8] sm:$0xff]
        %v204 = vld [vmem:[#allocation2 + $0x10] sm:$0xff]
        %v205 = vld [vmem:[#allocation2 + $0x18] sm:$0xff]
        %v206 = vld [vmem:[#allocation2 + $0x20] sm:$0xff]
        %v207 = vld [vmem:[#allocation2 + $0x28] sm:$0xff]
        %v208 = vld [vmem:[#allocation2 + $0x30] sm:$0xff]
        %v209 = vld [vmem:[#allocation2 + $0x38] sm:$0xff]
        %v210 = vld [vmem:[#allocation2 + $0x40] sm:$0xff]
        %v211 = vld [vmem:[#allocation2 + $0x48] sm:$0xff]
        %v212 = vld [vmem:[#allocation2 + $0x50] sm:$0xff]
        %v213 = vld [vmem:[#allocation2 + $0x58] sm:$0xff]
        %v214 = vld [vmem:[#allocation2 + $0x60] sm:$0xff]
        %v215 = vld [vmem:[#allocation2 + $0x68] sm:$0xff]
        %v216 = vld [vmem:[#allocation2 + $0x70] sm:$0xff]
        %v217 = vld [vmem:[#allocation2 + $0x78] sm:$0xff]
        %v218 = vld [vmem:[#allocation2 + $0x80] sm:$0xff]
        %v219 = vld [vmem:[#allocation2 + $0x88] sm:$0xff]
        %v220 = vld [vmem:[#allocation2 + $0x90] sm:$0xff]
        %v221 = vld [vmem:[#allocation2 + $0x98] sm:$0xff]
        %v222 = vld [vmem:[#allocation2 + $0xa0] sm:$0xff]
        %v223 = vld [vmem:[#allocation2 + $0xa8] sm:$0xff]
        %v224 = vld [vmem:[#allocation2 + $0xb0] sm:$0xff]
        %v225 = vld [vmem:[#allocation2 + $0xb8] sm:$0xff]
        %v226 = vld [vmem:[#allocation2 + $0xc0] sm:$0xff]
        %v227 = vld [vmem:[#allocation2 + $0xc8] sm:$0xff]
        %v228 = vld [vmem:[#allocation2 + $0xd0] sm:$0xff]
        %v229 = vld [vmem:[#allocation2 + $0xd8] sm:$0xff]
        %v230 = vld [vmem:[#allocation2 + $0xe0] sm:$0xff]
        %v231 = vld [vmem:[#allocation2 + $0xe8] sm:$0xff]
        %v232 = vld [vmem:[#allocation2 + $0xf0] sm:$0xff]
        %v233 = vld [vmem:[#allocation2 + $0xf8] sm:$0xff]
        %v234 = vld [vmem:[#allocation2 + $0x100] sm:$0xff]
        %v235 = vld [vmem:[#allocation2 + $0x108] sm:$0xff]
        %v236 = vld [vmem:[#allocation2 + $0x110] sm:$0xff]
        %v237 = vld [vmem:[#allocation2 + $0x118] sm:$0xff]
        %v238 = vld [vmem:[#allocation2 + $0x120] sm:$0xff]
        %v239 = vld [vmem:[#allocation2 + $0x128] sm:$0xff]
        %v240 = vld [vmem:[#allocation2 + $0x130] sm:$0xff]
        %v241 = vld [vmem:[#allocation2 + $0x138] sm:$0xff]
        %v242 = vld [vmem:[#allocation2 + $0x140] sm:$0xff]
        %v243 = vld [vmem:[#allocation2 + $0x148] sm:$0xff]
        %v244 = vld [vmem:[#allocation2 + $0x150] sm:$0xff]
        %v245 = vld [vmem:[#allocation2 + $0x158] sm:$0xff]
        %v246 = vld [vmem:[#allocation2 + $0x160] sm:$0xff]
        %v247 = vld [vmem:[#allocation2 + $0x168] sm:$0xff]
        %v248 = vld [vmem:[#allocation2 + $0x170] sm:$0xff]
        %v249 = vld [vmem:[#allocation2 + $0x178] sm:$0xff]
        %v250 = vld [vmem:[#allocation2 + $0x180] sm:$0xff]
        %v251 = vld [vmem:[#allocation2 + $0x188] sm:$0xff]
        %v252 = vld [vmem:[#allocation2 + $0x190] sm:$0xff]
        %v253 = vld [vmem:[#allocation2 + $0x198] sm:$0xff]
        %v254 = vld [vmem:[#allocation2 + $0x1a0] sm:$0xff]
        %v255 = vld [vmem:[#allocation2 + $0x1a8] sm:$0xff]
        %v256 = vld [vmem:[#allocation2 + $0x1b0] sm:$0xff]
        %v257 = vld [vmem:[#allocation2 + $0x1b8] sm:$0xff]
        %v258 = vld [vmem:[#allocation2 + $0x1c0] sm:$0xff]
        %v259 = vld [vmem:[#allocation2 + $0x1c8] sm:$0xff]
        %v260 = vld [vmem:[#allocation2 + $0x1d0] sm:$0xff]
        %v261 = vld [vmem:[#allocation2 + $0x1d8] sm:$0xff]
        %v262 = vld [vmem:[#allocation2 + $0x1e0] sm:$0xff]
        %v263 = vld [vmem:[#allocation2 + $0x1e8] sm:$0xff]
        %v264 = vld [vmem:[#allocation2 + $0x1f0] sm:$0xff]
        %v265 = vld [vmem:[#allocation2 + $0x1f8] sm:$0xff]
        %v266 = vld [vmem:[#allocation2 + $0x200] sm:$0xff]
        %v267 = vld [vmem:[#allocation2 + $0x208] sm:$0xff]
        %v268 = vld [vmem:[#allocation2 + $0x210] sm:$0xff]
        %v269 = vld [vmem:[#allocation2 + $0x218] sm:$0xff]
        %v270 = vld [vmem:[#allocation2 + $0x220] sm:$0xff]
        %v271 = vld [vmem:[#allocation2 + $0x228] sm:$0xff]
        %v272 = vld [vmem:[#allocation2 + $0x230] sm:$0xff]
        %v273 = vld [vmem:[#allocation2 + $0x238] sm:$0xff]
        %v274 = vld [vmem:[#allocation2 + $0x240] sm:$0xff]
        %v275 = vld [vmem:[#allocation2 + $0x248] sm:$0xff]
        %v276 = vld [vmem:[#allocation2 + $0x250] sm:$0xff]
        %v277 = vld [vmem:[#allocation5] sm:$0xff]
        %v278 = vld [vmem:[#allocation5 + $0x8] sm:$0xff]
        %v279 = vld [vmem:[#allocation5 + $0x10] sm:$0xff]
        %v280 = vld [vmem:[#allocation5 + $0x18] sm:$0xff]
        %v281 = vld [vmem:[#allocation5 + $0x20] sm:$0xff]
        %v282 = vld [vmem:[#allocation5 + $0x28] sm:$0xff]
        %v283 = vld [vmem:[#allocation5 + $0x30] sm:$0xff]
        %v284 = vld [vmem:[#allocation5 + $0x38] sm:$0xff]
        %v285 = vld [vmem:[#allocation5 + $0x40] sm:$0xff]
        %v286 = vld [vmem:[#allocation5 + $0x48] sm:$0xff]
        %v287 = vld [vmem:[#allocation5 + $0x50] sm:$0xff]
        %v288 = vld [vmem:[#allocation5 + $0x58] sm:$0xff]
        %v289 = vld [vmem:[#allocation5 + $0x60] sm:$0xff]
        %v290 = vld [vmem:[#allocation5 + $0x68] sm:$0xff]
        %v291 = vld [vmem:[#allocation5 + $0x70] sm:$0xff]
        %v292 = vld [vmem:[#allocation5 + $0x78] sm:$0xff]
        %v293 = vld [vmem:[#allocation5 + $0x80] sm:$0xff]
        %v294 = vld [vmem:[#allocation5 + $0x88] sm:$0xff]
        %v295 = vld [vmem:[#allocation5 + $0x90] sm:$0xff]
        %v296 = vld [vmem:[#allocation5 + $0x98] sm:$0xff]
        %v297 = vld [vmem:[#allocation5 + $0xa0] sm:$0xff]
        %v298 = vld [vmem:[#allocation5 + $0xa8] sm:$0xff]
        %v299 = vld [vmem:[#allocation5 + $0xb0] sm:$0xff]
        %v300 = vld [vmem:[#allocation5 + $0xb8] sm:$0xff]
        %v301 = vld [vmem:[#allocation5 + $0xc0] sm:$0xff]
        %v302 = vld [vmem:[#allocation5 + $0xc8] sm:$0xff]
        %v303 = vld [vmem:[#allocation5 + $0xd0] sm:$0xff]
        %v304 = vld [vmem:[#allocation5 + $0xd8] sm:$0xff]
        %v305 = vld [vmem:[#allocation5 + $0xe0] sm:$0xff]
        %v306 = vld [vmem:[#allocation5 + $0xe8] sm:$0xff]
        %v307 = vld [vmem:[#allocation5 + $0xf0] sm:$0xff]
        %v308 = vld [vmem:[#allocation5 + $0xf8] sm:$0xff]
        %v309 = vld [vmem:[#allocation5 + $0x100] sm:$0xff]
        %v310 = vld [vmem:[#allocation5 + $0x108] sm:$0xff]
        %v311 = vld [vmem:[#allocation5 + $0x110] sm:$0xff]
        %v312 = vld [vmem:[#allocation5 + $0x118] sm:$0xff]
        %v313 = vld [vmem:[#allocation5 + $0x120] sm:$0xff]
        %v314 = vld [vmem:[#allocation5 + $0x128] sm:$0xff]
        %v315 = vld [vmem:[#allocation5 + $0x130] sm:$0xff]
        %v316 = vld [vmem:[#allocation5 + $0x138] sm:$0xff]
        %v317 = vld [vmem:[#allocation5 + $0x140] sm:$0xff]
        %v318 = vld [vmem:[#allocation5 + $0x148] sm:$0xff]
        %v319 = vld [vmem:[#allocation5 + $0x150] sm:$0xff]
        %v320 = vld [vmem:[#allocation5 + $0x158] sm:$0xff]
        %v321 = vld [vmem:[#allocation5 + $0x160] sm:$0xff]
        %v322 = vld [vmem:[#allocation5 + $0x168] sm:$0xff]
        %v323 = vld [vmem:[#allocation5 + $0x170] sm:$0xff]
        %v324 = vld [vmem:[#allocation5 + $0x178] sm:$0xff]
        %v325 = vld [vmem:[#allocation5 + $0x180] sm:$0xff]
        %v326 = vld [vmem:[#allocation5 + $0x188] sm:$0xff]
        %v327 = vld [vmem:[#allocation5 + $0x190] sm:$0xff]
        %v328 = vld [vmem:[#allocation5 + $0x198] sm:$0xff]
        %v329 = vld [vmem:[#allocation5 + $0x1a0] sm:$0xff]
        %v330 = vld [vmem:[#allocation5 + $0x1a8] sm:$0xff]
        %v331 = vld [vmem:[#allocation5 + $0x1b0] sm:$0xff]
        %v332 = vld [vmem:[#allocation5 + $0x1b8] sm:$0xff]
        %v333 = vld [vmem:[#allocation5 + $0x1c0] sm:$0xff]
        %v334 = vld [vmem:[#allocation5 + $0x1c8] sm:$0xff]
        %v335 = vld [vmem:[#allocation5 + $0x1d0] sm:$0xff]
        %v336 = vld [vmem:[#allocation5 + $0x1d8] sm:$0xff]
        %v337 = vld [vmem:[#allocation5 + $0x1e0] sm:$0xff]
        %v338 = vld [vmem:[#allocation5 + $0x1e8] sm:$0xff]
        %v339 = vld [vmem:[#allocation5 + $0x1f0] sm:$0xff]
        %v340 = vld [vmem:[#allocation5 + $0x1f8] sm:$0xff]
        %v341 = vld [vmem:[#allocation5 + $0x200] sm:$0xff]
        %v342 = vld [vmem:[#allocation5 + $0x208] sm:$0xff]
        %v343 = vld [vmem:[#allocation5 + $0x210] sm:$0xff]
        %v344 = vld [vmem:[#allocation5 + $0x218] sm:$0xff]
        %v345 = vld [vmem:[#allocation5 + $0x220] sm:$0xff]
        %v346 = vld [vmem:[#allocation5 + $0x228] sm:$0xff]
        %v347 = vld [vmem:[#allocation5 + $0x230] sm:$0xff]
        %v348 = vld [vmem:[#allocation5 + $0x238] sm:$0xff]
        %v349 = vld [vmem:[#allocation5 + $0x240] sm:$0xff]
        %v350 = vld [vmem:[#allocation5 + $0x248] sm:$0xff]
        %v351 = vld [vmem:[#allocation5 + $0x250] sm:$0xff]
        %v352 = vadd.f32 %v202, %v277
        %v353 = vadd.f32 %v203, %v278
        %v354 = vadd.f32 %v204, %v279
        %v355 = vadd.f32 %v205, %v280
        %v356 = vadd.f32 %v206, %v281
        %v357 = vadd.f32 %v207, %v282
        %v358 = vadd.f32 %v208, %v283
        %v359 = vadd.f32 %v209, %v284
        %v360 = vadd.f32 %v210, %v285
        %v361 = vadd.f32 %v211, %v286
        %v362 = vadd.f32 %v212, %v287
        %v363 = vadd.f32 %v213, %v288
        %v364 = vadd.f32 %v214, %v289
        %v365 = vadd.f32 %v215, %v290
        %v366 = vadd.f32 %v216, %v291
        %v367 = vadd.f32 %v217, %v292
        %v368 = vadd.f32 %v218, %v293
        %v369 = vadd.f32 %v219, %v294
        %v370 = vadd.f32 %v220, %v295
        %v371 = vadd.f32 %v221, %v296
        %v372 = vadd.f32 %v222, %v297
        %v373 = vadd.f32 %v223, %v298
        %v374 = vadd.f32 %v224, %v299
        %v375 = vadd.f32 %v225, %v300
        %v376 = vadd.f32 %v226, %v301
        %v377 = vadd.f32 %v227, %v302
        %v378 = vadd.f32 %v228, %v303
        %v379 = vadd.f32 %v229, %v304
        %v380 = vadd.f32 %v230, %v305
        %v381 = vadd.f32 %v231, %v306
        %v382 = vadd.f32 %v232, %v307
        %v383 = vadd.f32 %v233, %v308
        %v384 = vadd.f32 %v234, %v309
        %v385 = vadd.f32 %v235, %v310
        %v386 = vadd.f32 %v236, %v311
        %v387 = vadd.f32 %v237, %v312
        %v388 = vadd.f32 %v238, %v313
        %v389 = vadd.f32 %v239, %v314
        %v390 = vadd.f32 %v240, %v315
        %v391 = vadd.f32 %v241, %v316
        %v392 = vadd.f32 %v242, %v317
        %v393 = vadd.f32 %v243, %v318
        %v394 = vadd.f32 %v244, %v319
        %v395 = vadd.f32 %v245, %v320
        %v396 = vadd.f32 %v246, %v321
        %v397 = vadd.f32 %v247, %v322
        %v398 = vadd.f32 %v248, %v323
        %v399 = vadd.f32 %v249, %v324
        %v400 = vadd.f32 %v250, %v325
        %v401 = vadd.f32 %v251, %v326
        %v402 = vadd.f32 %v252, %v327
        %v403 = vadd.f32 %v253, %v328
        %v404 = vadd.f32 %v254, %v329
        %v405 = vadd.f32 %v255, %v330
        %v406 = vadd.f32 %v256, %v331
        %v407 = vadd.f32 %v257, %v332
        %v408 = vadd.f32 %v258, %v333
        %v409 = vadd.f32 %v259, %v334
        %v410 = vadd.f32 %v260, %v335
        %v411 = vadd.f32 %v261, %v336
        %v412 = vadd.f32 %v262, %v337
        %v413 = vadd.f32 %v263, %v338
        %v414 = vadd.f32 %v264, %v339
        %v415 = vadd.f32 %v265, %v340
        %v416 = vadd.f32 %v266, %v341
        %v417 = vadd.f32 %v267, %v342
        %v418 = vadd.f32 %v268, %v343
        %v419 = vadd.f32 %v269, %v344
        %v420 = vadd.f32 %v270, %v345
        %v421 = vadd.f32 %v271, %v346
        %v422 = vadd.f32 %v272, %v347
        %v423 = vadd.f32 %v273, %v348
        %v424 = vadd.f32 %v274, %v349
        %v425 = vadd.f32 %v275, %v350
        %v426 = vadd.f32 %v276, %v351
        %v427 = vld [vmem:[%s199] sm:$0xff]
        %v428 = vld [vmem:[%s199 + $0x8] sm:$0xff]
        %v429 = vld [vmem:[%s199 + $0x10] sm:$0xff]
        %v430 = vld [vmem:[%s199 + $0x18] sm:$0xff]
        %v431 = vld [vmem:[%s199 + $0x20] sm:$0xff]
        %v432 = vld [vmem:[%s199 + $0x28] sm:$0xff]
        %v433 = vld [vmem:[%s199 + $0x30] sm:$0xff]
        %v434 = vld [vmem:[%s199 + $0x38] sm:$0xff]
        %v435 = vld [vmem:[%s199 + $0x40] sm:$0xff]
        %vm436 = vcmask 195584
        %v438 = vsel %vm436, %v427, 0
        %v441 = vsel %vm436, %v428, 0
        %v444 = vsel %vm436, %v429, 0
        %v447 = vsel %vm436, %v430, 0
        %v450 = vsel %vm436, %v431, 0
        %v453 = vsel %vm436, %v432, 0
        %v456 = vsel %vm436, %v433, 0
        %v459 = vsel %vm436, %v434, 0
        %v462 = vsel %vm436, %v435, 0
        %464 = vmatprep.subr.mxu0 0.0
        %465 = vmatpush1.msra.mxu0 0.0
        %466 = vmatprep.subr.mxu0 0.0
        %467 = vmatpush1.msra.mxu0 0.0
        %468 = vmatprep.subr.mxu0 0.0
        %469 = vmatpush1.msra.mxu0 0.0
        %470 = vmatprep.subr.mxu0 0.0
        %471 = vmatpush1.msra.mxu0 0.0
        %472 = vmatprep.subr.mxu0 0.0
        %473 = vmatpush1.msra.mxu0 0.0
        %474 = vmatprep.subr.mxu0 0.0
        %475 = vmatpush1.msra.mxu0 0.0
        %476 = vmatprep.subr.mxu0 0.0
        %477 = vmatpush1.msra.mxu0 0.0
        %478 = vmatprep.subr.mxu0 0.0
        %479 = vmatpush1.msra.mxu0 0.0
        %480 = vmatprep.subr.mxu0 0.0
        %481 = vmatpush1.msra.mxu0 0.0
        %482 = vmatprep.subr.mxu0 0.0
        %483 = vmatpush1.msra.mxu0 0.0
        %484 = vmatprep.subr.mxu0 0.0
        %485 = vmatpush1.msra.mxu0 0.0
        %486 = vmatprep.subr.mxu0 0.0
        %487 = vmatpush1.msra.mxu0 0.0
        %488 = vmatprep.subr.mxu0 0.0
        %489 = vmatpush1.msra.mxu0 0.0
        %490 = vmatprep.subr.mxu0 %v403
        %491 = vmatpush1.msra.mxu0 %v402
        %492 = vmatprep.subr.mxu0 %v378
        %493 = vmatpush1.msra.mxu0 %v377
        %494 = vmatprep.subr.mxu0 %v353
        %495 = vmatpush1.msra.mxu0 %v352
        %496 = vmatprep.subr.mxu0 0.0
        %497 = vmatpush2.msra.mxu0 0.0
        %498 = vmatprep.subr.mxu0 0.0
        %499 = vmatpush2.msra.mxu0 0.0
        %500 = vmatprep.subr.mxu0 0.0
        %501 = vmatpush2.msra.mxu0 0.0
        %502 = vmatprep.subr.mxu0 0.0
        %503 = vmatpush2.msra.mxu0 0.0
        %504 = vmatprep.subr.mxu0 0.0
        %505 = vmatpush2.msra.mxu0 0.0
        %506 = vmatprep.subr.mxu0 0.0
        %507 = vmatpush2.msra.mxu0 0.0
        %508 = vmatprep.subr.mxu0 0.0
        %509 = vmatpush2.msra.mxu0 0.0
        %510 = vmatprep.subr.mxu0 0.0
        %511 = vmatpush2.msra.mxu0 0.0
        %512 = vmatprep.subr.mxu0 0.0
        %513 = vmatpush2.msra.mxu0 0.0
        %514 = vmatprep.subr.mxu0 0.0
        %515 = vmatpush2.msra.mxu0 0.0
        %516 = vmatprep.subr.mxu0 0.0
        %517 = vmatpush2.msra.mxu0 0.0
        %518 = vmatprep.subr.mxu0 0.0
        %519 = vmatpush2.msra.mxu0 0.0
        %520 = vmatprep.subr.mxu0 0.0
        %521 = vmatpush2.msra.mxu0 0.0
        %522 = vmatprep.subr.mxu0 0.0
        %523 = vmatpush2.msra.mxu0 0.0
        %524 = vmatprep.subr.mxu0 0.0
        %525 = vmatpush2.msra.mxu0 0.0
        %526 = vmatprep.subr.mxu0 0.0
        %527 = vmatpush2.msra.mxu0 0.0
        %528 = vmatprep.mubr.f32.mxu0 0.0
        %529 = vmatmul.mubr.f32.gmra.mxu0 %v438
        %v530 = vpop.f32.mrf.mxu0
        %v531 = vadd.f32 0.0, %v530
        %v532 = vpop.f32.mrf.mxu0
        %v533 = vadd.f32 0.0, %v532
        %534 = vmatprep.mubr.f32.mxu0 0.0
        %535 = vmatmul.mubr.f32.gmra.mxu0 %v441
        %v536 = vpop.f32.mrf.mxu0
        %v537 = vadd.f32 0.0, %v536
        %v538 = vpop.f32.mrf.mxu0
        %v539 = vadd.f32 0.0, %v538
        %540 = vmatprep.mubr.f32.mxu0 0.0
        %541 = vmatmul.mubr.f32.gmra.mxu0 %v444
        %v542 = vpop.f32.mrf.mxu0
        %v543 = vadd.f32 0.0, %v542
        %v544 = vpop.f32.mrf.mxu0
        %v545 = vadd.f32 0.0, %v544
        %546 = vmatprep.mubr.f32.mxu0 0.0
        %547 = vmatmul.mubr.f32.gmra.mxu0 %v447
        %v548 = vpop.f32.mrf.mxu0
        %v549 = vadd.f32 0.0, %v548
        %v550 = vpop.f32.mrf.mxu0
        %v551 = vadd.f32 0.0, %v550
        %552 = vmatprep.mubr.f32.mxu0 0.0
        %553 = vmatmul.mubr.f32.gmra.mxu0 %v450
        %v554 = vpop.f32.mrf.mxu0
        %v555 = vadd.f32 0.0, %v554
        %v556 = vpop.f32.mrf.mxu0
        %v557 = vadd.f32 0.0, %v556
        %558 = vmatprep.mubr.f32.mxu0 0.0
        %559 = vmatmul.mubr.f32.gmra.mxu0 %v453
        %v560 = vpop.f32.mrf.mxu0
        %v561 = vadd.f32 0.0, %v560
        %v562 = vpop.f32.mrf.mxu0
        %v563 = vadd.f32 0.0, %v562
        %564 = vmatprep.mubr.f32.mxu0 0.0
        %565 = vmatmul.mubr.f32.gmra.mxu0 %v456
        %v566 = vpop.f32.mrf.mxu0
        %v567 = vadd.f32 0.0, %v566
        %v568 = vpop.f32.mrf.mxu0
        %v569 = vadd.f32 0.0, %v568
        %570 = vmatprep.mubr.f32.mxu0 0.0
        %571 = vmatmul.mubr.f32.gmra.mxu0 %v459
        %v572 = vpop.f32.mrf.mxu0
        %v573 = vadd.f32 0.0, %v572
        %v574 = vpop.f32.mrf.mxu0
        %v575 = vadd.f32 0.0, %v574
        %576 = vmatprep.mubr.f32.mxu0 0.0
        %577 = vmatmul.mubr.f32.gmra.mxu0 %v462
        %v578 = vpop.f32.mrf.mxu0
        %v579 = vadd.f32 0.0, %v578
        %v580 = vpop.f32.mrf.mxu0
        %v581 = vadd.f32 0.0, %v580
        %582 = vdwg.mxu0
        %583 = vmatprep.subr.mxu0 0.0
        %584 = vmatpush1.msra.mxu0 0.0
        %585 = vmatprep.subr.mxu0 0.0
        %586 = vmatpush1.msra.mxu0 0.0
        %587 = vmatprep.subr.mxu0 0.0
        %588 = vmatpush1.msra.mxu0 0.0
        %589 = vmatprep.subr.mxu0 0.0
        %590 = vmatpush1.msra.mxu0 0.0
        %591 = vmatprep.subr.mxu0 0.0
        %592 = vmatpush1.msra.mxu0 0.0
        %593 = vmatprep.subr.mxu0 0.0
        %594 = vmatpush1.msra.mxu0 0.0
        %595 = vmatprep.subr.mxu0 0.0
        %596 = vmatpush1.msra.mxu0 0.0
        %597 = vmatprep.subr.mxu0 0.0
        %598 = vmatpush1.msra.mxu0 0.0
        %599 = vmatprep.subr.mxu0 0.0
        %600 = vmatpush1.msra.mxu0 0.0
        %601 = vmatprep.subr.mxu0 0.0
        %602 = vmatpush1.msra.mxu0 0.0
        %603 = vmatprep.subr.mxu0 0.0
        %604 = vmatpush1.msra.mxu0 0.0
        %605 = vmatprep.subr.mxu0 0.0
        %606 = vmatpush1.msra.mxu0 0.0
        %607 = vmatprep.subr.mxu0 0.0
        %608 = vmatpush1.msra.mxu0 0.0
        %609 = vmatprep.subr.mxu0 %v405
        %610 = vmatpush1.msra.mxu0 %v404
        %611 = vmatprep.subr.mxu0 %v380
        %612 = vmatpush1.msra.mxu0 %v379
        %613 = vmatprep.subr.mxu0 %v355
        %614 = vmatpush1.msra.mxu0 %v354
        %615 = vmatprep.subr.mxu0 0.0
        %616 = vmatpush2.msra.mxu0 0.0
        %617 = vmatprep.subr.mxu0 0.0
        %618 = vmatpush2.msra.mxu0 0.0
        %619 = vmatprep.subr.mxu0 0.0
        %620 = vmatpush2.msra.mxu0 0.0
        %621 = vmatprep.subr.mxu0 0.0
        %622 = vmatpush2.msra.mxu0 0.0
        %623 = vmatprep.subr.mxu0 0.0
        %624 = vmatpush2.msra.mxu0 0.0
        %625 = vmatprep.subr.mxu0 0.0
        %626 = vmatpush2.msra.mxu0 0.0
        %627 = vmatprep.subr.mxu0 0.0
        %628 = vmatpush2.msra.mxu0 0.0
        %629 = vmatprep.subr.mxu0 0.0
        %630 = vmatpush2.msra.mxu0 0.0
        %631 = vmatprep.subr.mxu0 0.0
        %632 = vmatpush2.msra.mxu0 0.0
        %633 = vmatprep.subr.mxu0 0.0
        %634 = vmatpush2.msra.mxu0 0.0
        %635 = vmatprep.subr.mxu0 0.0
        %636 = vmatpush2.msra.mxu0 0.0
        %637 = vmatprep.subr.mxu0 0.0
        %638 = vmatpush2.msra.mxu0 0.0
        %639 = vmatprep.subr.mxu0 0.0
        %640 = vmatpush2.msra.mxu0 0.0
        %641 = vmatprep.subr.mxu0 0.0
        %642 = vmatpush2.msra.mxu0 0.0
        %643 = vmatprep.subr.mxu0 0.0
        %644 = vmatpush2.msra.mxu0 0.0
        %645 = vmatprep.subr.mxu0 0.0
        %646 = vmatpush2.msra.mxu0 0.0
        %647 = vmatprep.mubr.f32.mxu0 0.0
        %648 = vmatmul.mubr.f32.gmra.mxu0 %v438
        %v649 = vpop.f32.mrf.mxu0
        %v650 = vadd.f32 0.0, %v649
        %v651 = vpop.f32.mrf.mxu0
        %v652 = vadd.f32 0.0, %v651
        %653 = vmatprep.mubr.f32.mxu0 0.0
        %654 = vmatmul.mubr.f32.gmra.mxu0 %v441
        %v655 = vpop.f32.mrf.mxu0
        %v656 = vadd.f32 0.0, %v655
        %v657 = vpop.f32.mrf.mxu0
        %v658 = vadd.f32 0.0, %v657
        %659 = vmatprep.mubr.f32.mxu0 0.0
        %660 = vmatmul.mubr.f32.gmra.mxu0 %v444
        %v661 = vpop.f32.mrf.mxu0
        %v662 = vadd.f32 0.0, %v661
        %v663 = vpop.f32.mrf.mxu0
        %v664 = vadd.f32 0.0, %v663
        %665 = vmatprep.mubr.f32.mxu0 0.0
        %666 = vmatmul.mubr.f32.gmra.mxu0 %v447
        %v667 = vpop.f32.mrf.mxu0
        %v668 = vadd.f32 0.0, %v667
        %v669 = vpop.f32.mrf.mxu0
        %v670 = vadd.f32 0.0, %v669
        %671 = vmatprep.mubr.f32.mxu0 0.0
        %672 = vmatmul.mubr.f32.gmra.mxu0 %v450
        %v673 = vpop.f32.mrf.mxu0
        %v674 = vadd.f32 0.0, %v673
        %v675 = vpop.f32.mrf.mxu0
        %v676 = vadd.f32 0.0, %v675
        %677 = vmatprep.mubr.f32.mxu0 0.0
        %678 = vmatmul.mubr.f32.gmra.mxu0 %v453
        %v679 = vpop.f32.mrf.mxu0
        %v680 = vadd.f32 0.0, %v679
        %v681 = vpop.f32.mrf.mxu0
        %v682 = vadd.f32 0.0, %v681
        %683 = vmatprep.mubr.f32.mxu0 0.0
        %684 = vmatmul.mubr.f32.gmra.mxu0 %v456
        %v685 = vpop.f32.mrf.mxu0
        %v686 = vadd.f32 0.0, %v685
        %v687 = vpop.f32.mrf.mxu0
        %v688 = vadd.f32 0.0, %v687
        %689 = vmatprep.mubr.f32.mxu0 0.0
        %690 = vmatmul.mubr.f32.gmra.mxu0 %v459
        %v691 = vpop.f32.mrf.mxu0
        %v692 = vadd.f32 0.0, %v691
        %v693 = vpop.f32.mrf.mxu0
        %v694 = vadd.f32 0.0, %v693
        %695 = vmatprep.mubr.f32.mxu0 0.0
        %696 = vmatmul.mubr.f32.gmra.mxu0 %v462
        %v697 = vpop.f32.mrf.mxu0
        %v698 = vadd.f32 0.0, %v697
        %v699 = vpop.f32.mrf.mxu0
        %v700 = vadd.f32 0.0, %v699
        %701 = vdwg.mxu0
        %702 = vmatprep.subr.mxu0 0.0
        %703 = vmatpush1.msra.mxu0 0.0
        %704 = vmatprep.subr.mxu0 0.0
        %705 = vmatpush1.msra.mxu0 0.0
        %706 = vmatprep.subr.mxu0 0.0
        %707 = vmatpush1.msra.mxu0 0.0
        %708 = vmatprep.subr.mxu0 0.0
        %709 = vmatpush1.msra.mxu0 0.0
        %710 = vmatprep.subr.mxu0 0.0
        %711 = vmatpush1.msra.mxu0 0.0
        %712 = vmatprep.subr.mxu0 0.0
        %713 = vmatpush1.msra.mxu0 0.0
        %714 = vmatprep.subr.mxu0 0.0
        %715 = vmatpush1.msra.mxu0 0.0
        %716 = vmatprep.subr.mxu0 0.0
        %717 = vmatpush1.msra.mxu0 0.0
        %718 = vmatprep.subr.mxu0 0.0
        %719 = vmatpush1.msra.mxu0 0.0
        %720 = vmatprep.subr.mxu0 0.0
        %721 = vmatpush1.msra.mxu0 0.0
        %722 = vmatprep.subr.mxu0 0.0
        %723 = vmatpush1.msra.mxu0 0.0
        %724 = vmatprep.subr.mxu0 0.0
        %725 = vmatpush1.msra.mxu0 0.0
        %726 = vmatprep.subr.mxu0 0.0
        %727 = vmatpush1.msra.mxu0 0.0
        %728 = vmatprep.subr.mxu0 %v407
        %729 = vmatpush1.msra.mxu0 %v406
        %730 = vmatprep.subr.mxu0 %v382
        %731 = vmatpush1.msra.mxu0 %v381
        %732 = vmatprep.subr.mxu0 %v357
        %733 = vmatpush1.msra.mxu0 %v356
        %734 = vmatprep.subr.mxu0 0.0
        %735 = vmatpush2.msra.mxu0 0.0
        %736 = vmatprep.subr.mxu0 0.0
        %737 = vmatpush2.msra.mxu0 0.0
        %738 = vmatprep.subr.mxu0 0.0
        %739 = vmatpush2.msra.mxu0 0.0
        %740 = vmatprep.subr.mxu0 0.0
        %741 = vmatpush2.msra.mxu0 0.0
        %742 = vmatprep.subr.mxu0 0.0
        %743 = vmatpush2.msra.mxu0 0.0
        %744 = vmatprep.subr.mxu0 0.0
        %745 = vmatpush2.msra.mxu0 0.0
        %746 = vmatprep.subr.mxu0 0.0
        %747 = vmatpush2.msra.mxu0 0.0
        %748 = vmatprep.subr.mxu0 0.0
        %749 = vmatpush2.msra.mxu0 0.0
        %750 = vmatprep.subr.mxu0 0.0
        %751 = vmatpush2.msra.mxu0 0.0
        %752 = vmatprep.subr.mxu0 0.0
        %753 = vmatpush2.msra.mxu0 0.0
        %754 = vmatprep.subr.mxu0 0.0
        %755 = vmatpush2.msra.mxu0 0.0
        %756 = vmatprep.subr.mxu0 0.0
        %757 = vmatpush2.msra.mxu0 0.0
        %758 = vmatprep.subr.mxu0 0.0
        %759 = vmatpush2.msra.mxu0 0.0
        %760 = vmatprep.subr.mxu0 0.0
        %761 = vmatpush2.msra.mxu0 0.0
        %762 = vmatprep.subr.mxu0 0.0
        %763 = vmatpush2.msra.mxu0 0.0
        %764 = vmatprep.subr.mxu0 0.0
        %765 = vmatpush2.msra.mxu0 0.0
        %766 = vmatprep.mubr.f32.mxu0 0.0
        %767 = vmatmul.mubr.f32.gmra.mxu0 %v438
        %v768 = vpop.f32.mrf.mxu0
        %v769 = vadd.f32 0.0, %v768
        %v770 = vpop.f32.mrf.mxu0
        %v771 = vadd.f32 0.0, %v770
        %772 = vmatprep.mubr.f32.mxu0 0.0
        %773 = vmatmul.mubr.f32.gmra.mxu0 %v441
        %v774 = vpop.f32.mrf.mxu0
        %v775 = vadd.f32 0.0, %v774
        %v776 = vpop.f32.mrf.mxu0
        %v777 = vadd.f32 0.0, %v776
        %778 = vmatprep.mubr.f32.mxu0 0.0
        %779 = vmatmul.mubr.f32.gmra.mxu0 %v444
        %v780 = vpop.f32.mrf.mxu0
        %v781 = vadd.f32 0.0, %v780
        %v782 = vpop.f32.mrf.mxu0
        %v783 = vadd.f32 0.0, %v782
        %784 = vmatprep.mubr.f32.mxu0 0.0
        %785 = vmatmul.mubr.f32.gmra.mxu0 %v447
        %v786 = vpop.f32.mrf.mxu0
        %v787 = vadd.f32 0.0, %v786
        %v788 = vpop.f32.mrf.mxu0
        %v789 = vadd.f32 0.0, %v788
        %790 = vmatprep.mubr.f32.mxu0 0.0
        %791 = vmatmul.mubr.f32.gmra.mxu0 %v450
        %v792 = vpop.f32.mrf.mxu0
        %v793 = vadd.f32 0.0, %v792
        %v794 = vpop.f32.mrf.mxu0
        %v795 = vadd.f32 0.0, %v794
        %796 = vmatprep.mubr.f32.mxu0 0.0
        %797 = vmatmul.mubr.f32.gmra.mxu0 %v453
        %v798 = vpop.f32.mrf.mxu0
        %v799 = vadd.f32 0.0, %v798
        %v800 = vpop.f32.mrf.mxu0
        %v801 = vadd.f32 0.0, %v800
        %802 = vmatprep.mubr.f32.mxu0 0.0
        %803 = vmatmul.mubr.f32.gmra.mxu0 %v456
        %v804 = vpop.f32.mrf.mxu0
        %v805 = vadd.f32 0.0, %v804
        %v806 = vpop.f32.mrf.mxu0
        %v807 = vadd.f32 0.0, %v806
        %808 = vmatprep.mubr.f32.mxu0 0.0
        %809 = vmatmul.mubr.f32.gmra.mxu0 %v459
        %v810 = vpop.f32.mrf.mxu0
        %v811 = vadd.f32 0.0, %v810
        %v812 = vpop.f32.mrf.mxu0
        %v813 = vadd.f32 0.0, %v812
        %814 = vmatprep.mubr.f32.mxu0 0.0
        %815 = vmatmul.mubr.f32.gmra.mxu0 %v462
        %v816 = vpop.f32.mrf.mxu0
        %v817 = vadd.f32 0.0, %v816
        %v818 = vpop.f32.mrf.mxu0
        %v819 = vadd.f32 0.0, %v818
        %820 = vdwg.mxu0
        %821 = vmatprep.subr.mxu0 0.0
        %822 = vmatpush1.msra.mxu0 0.0
        %823 = vmatprep.subr.mxu0 0.0
        %824 = vmatpush1.msra.mxu0 0.0
        %825 = vmatprep.subr.mxu0 0.0
        %826 = vmatpush1.msra.mxu0 0.0
        %827 = vmatprep.subr.mxu0 0.0
        %828 = vmatpush1.msra.mxu0 0.0
        %829 = vmatprep.subr.mxu0 0.0
        %830 = vmatpush1.msra.mxu0 0.0
        %831 = vmatprep.subr.mxu0 0.0
        %832 = vmatpush1.msra.mxu0 0.0
        %833 = vmatprep.subr.mxu0 0.0
        %834 = vmatpush1.msra.mxu0 0.0
        %835 = vmatprep.subr.mxu0 0.0
        %836 = vmatpush1.msra.mxu0 0.0
        %837 = vmatprep.subr.mxu0 0.0
        %838 = vmatpush1.msra.mxu0 0.0
        %839 = vmatprep.subr.mxu0 0.0
        %840 = vmatpush1.msra.mxu0 0.0
        %841 = vmatprep.subr.mxu0 0.0
        %842 = vmatpush1.msra.mxu0 0.0
        %843 = vmatprep.subr.mxu0 0.0
        %844 = vmatpush1.msra.mxu0 0.0
        %845 = vmatprep.subr.mxu0 0.0
        %846 = vmatpush1.msra.mxu0 0.0
        %847 = vmatprep.subr.mxu0 %v409
        %848 = vmatpush1.msra.mxu0 %v408
        %849 = vmatprep.subr.mxu0 %v384
        %850 = vmatpush1.msra.mxu0 %v383
        %851 = vmatprep.subr.mxu0 %v359
        %852 = vmatpush1.msra.mxu0 %v358
        %853 = vmatprep.subr.mxu0 0.0
        %854 = vmatpush2.msra.mxu0 0.0
        %855 = vmatprep.subr.mxu0 0.0
        %856 = vmatpush2.msra.mxu0 0.0
        %857 = vmatprep.subr.mxu0 0.0
        %858 = vmatpush2.msra.mxu0 0.0
        %859 = vmatprep.subr.mxu0 0.0
        %860 = vmatpush2.msra.mxu0 0.0
        %861 = vmatprep.subr.mxu0 0.0
        %862 = vmatpush2.msra.mxu0 0.0
        %863 = vmatprep.subr.mxu0 0.0
        %864 = vmatpush2.msra.mxu0 0.0
        %865 = vmatprep.subr.mxu0 0.0
        %866 = vmatpush2.msra.mxu0 0.0
        %867 = vmatprep.subr.mxu0 0.0
        %868 = vmatpush2.msra.mxu0 0.0
        %869 = vmatprep.subr.mxu0 0.0
        %870 = vmatpush2.msra.mxu0 0.0
        %871 = vmatprep.subr.mxu0 0.0
        %872 = vmatpush2.msra.mxu0 0.0
        %873 = vmatprep.subr.mxu0 0.0
        %874 = vmatpush2.msra.mxu0 0.0
        %875 = vmatprep.subr.mxu0 0.0
        %876 = vmatpush2.msra.mxu0 0.0
        %877 = vmatprep.subr.mxu0 0.0
        %878 = vmatpush2.msra.mxu0 0.0
        %879 = vmatprep.subr.mxu0 0.0
        %880 = vmatpush2.msra.mxu0 0.0
        %881 = vmatprep.subr.mxu0 0.0
        %882 = vmatpush2.msra.mxu0 0.0
        %883 = vmatprep.subr.mxu0 0.0
        %884 = vmatpush2.msra.mxu0 0.0
        %885 = vmatprep.mubr.f32.mxu0 0.0
        %886 = vmatmul.mubr.f32.gmra.mxu0 %v438
        %v887 = vpop.f32.mrf.mxu0
        %v888 = vadd.f32 0.0, %v887
        %v889 = vpop.f32.mrf.mxu0
        %v890 = vadd.f32 0.0, %v889
        %891 = vmatprep.mubr.f32.mxu0 0.0
        %892 = vmatmul.mubr.f32.gmra.mxu0 %v441
        %v893 = vpop.f32.mrf.mxu0
        %v894 = vadd.f32 0.0, %v893
        %v895 = vpop.f32.mrf.mxu0
        %v896 = vadd.f32 0.0, %v895
        %897 = vmatprep.mubr.f32.mxu0 0.0
        %898 = vmatmul.mubr.f32.gmra.mxu0 %v444
        %v899 = vpop.f32.mrf.mxu0
        %v900 = vadd.f32 0.0, %v899
        %v901 = vpop.f32.mrf.mxu0
        %v902 = vadd.f32 0.0, %v901
        %903 = vmatprep.mubr.f32.mxu0 0.0
        %904 = vmatmul.mubr.f32.gmra.mxu0 %v447
        %v905 = vpop.f32.mrf.mxu0
        %v906 = vadd.f32 0.0, %v905
        %v907 = vpop.f32.mrf.mxu0
        %v908 = vadd.f32 0.0, %v907
        %909 = vmatprep.mubr.f32.mxu0 0.0
        %910 = vmatmul.mubr.f32.gmra.mxu0 %v450
        %v911 = vpop.f32.mrf.mxu0
        %v912 = vadd.f32 0.0, %v911
        %v913 = vpop.f32.mrf.mxu0
        %v914 = vadd.f32 0.0, %v913
        %915 = vmatprep.mubr.f32.mxu0 0.0
        %916 = vmatmul.mubr.f32.gmra.mxu0 %v453
        %v917 = vpop.f32.mrf.mxu0
        %v918 = vadd.f32 0.0, %v917
        %v919 = vpop.f32.mrf.mxu0
        %v920 = vadd.f32 0.0, %v919
        %921 = vmatprep.mubr.f32.mxu0 0.0
        %922 = vmatmul.mubr.f32.gmra.mxu0 %v456
        %v923 = vpop.f32.mrf.mxu0
        %v924 = vadd.f32 0.0, %v923
        %v925 = vpop.f32.mrf.mxu0
        %v926 = vadd.f32 0.0, %v925
        %927 = vmatprep.mubr.f32.mxu0 0.0
        %928 = vmatmul.mubr.f32.gmra.mxu0 %v459
        %v929 = vpop.f32.mrf.mxu0
        %v930 = vadd.f32 0.0, %v929
        %v931 = vpop.f32.mrf.mxu0
        %v932 = vadd.f32 0.0, %v931
        %933 = vmatprep.mubr.f32.mxu0 0.0
        %934 = vmatmul.mubr.f32.gmra.mxu0 %v462
        %v935 = vpop.f32.mrf.mxu0
        %v936 = vadd.f32 0.0, %v935
        %v937 = vpop.f32.mrf.mxu0
        %v938 = vadd.f32 0.0, %v937
        %939 = vdwg.mxu0
        %940 = vmatprep.subr.mxu0 0.0
        %941 = vmatpush1.msra.mxu0 0.0
        %942 = vmatprep.subr.mxu0 0.0
        %943 = vmatpush1.msra.mxu0 0.0
        %944 = vmatprep.subr.mxu0 0.0
        %945 = vmatpush1.msra.mxu0 0.0
        %946 = vmatprep.subr.mxu0 0.0
        %947 = vmatpush1.msra.mxu0 0.0
        %948 = vmatprep.subr.mxu0 0.0
        %949 = vmatpush1.msra.mxu0 0.0
        %950 = vmatprep.subr.mxu0 0.0
        %951 = vmatpush1.msra.mxu0 0.0
        %952 = vmatprep.subr.mxu0 0.0
        %953 = vmatpush1.msra.mxu0 0.0
        %954 = vmatprep.subr.mxu0 0.0
        %955 = vmatpush1.msra.mxu0 0.0
        %956 = vmatprep.subr.mxu0 0.0
        %957 = vmatpush1.msra.mxu0 0.0
        %958 = vmatprep.subr.mxu0 0.0
        %959 = vmatpush1.msra.mxu0 0.0
        %960 = vmatprep.subr.mxu0 0.0
        %961 = vmatpush1.msra.mxu0 0.0
        %962 = vmatprep.subr.mxu0 0.0
        %963 = vmatpush1.msra.mxu0 0.0
        %964 = vmatprep.subr.mxu0 0.0
        %965 = vmatpush1.msra.mxu0 0.0
        %966 = vmatprep.subr.mxu0 %v411
        %967 = vmatpush1.msra.mxu0 %v410
        %968 = vmatprep.subr.mxu0 %v386
        %969 = vmatpush1.msra.mxu0 %v385
        %970 = vmatprep.subr.mxu0 %v361
        %971 = vmatpush1.msra.mxu0 %v360
        %972 = vmatprep.subr.mxu0 0.0
        %973 = vmatpush2.msra.mxu0 0.0
        %974 = vmatprep.subr.mxu0 0.0
        %975 = vmatpush2.msra.mxu0 0.0
        %976 = vmatprep.subr.mxu0 0.0
        %977 = vmatpush2.msra.mxu0 0.0
        %978 = vmatprep.subr.mxu0 0.0
        %979 = vmatpush2.msra.mxu0 0.0
        %980 = vmatprep.subr.mxu0 0.0
        %981 = vmatpush2.msra.mxu0 0.0
        %982 = vmatprep.subr.mxu0 0.0
        %983 = vmatpush2.msra.mxu0 0.0
        %984 = vmatprep.subr.mxu0 0.0
        %985 = vmatpush2.msra.mxu0 0.0
        %986 = vmatprep.subr.mxu0 0.0
        %987 = vmatpush2.msra.mxu0 0.0
        %988 = vmatprep.subr.mxu0 0.0
        %989 = vmatpush2.msra.mxu0 0.0
        %990 = vmatprep.subr.mxu0 0.0
        %991 = vmatpush2.msra.mxu0 0.0
        %992 = vmatprep.subr.mxu0 0.0
        %993 = vmatpush2.msra.mxu0 0.0
        %994 = vmatprep.subr.mxu0 0.0
        %995 = vmatpush2.msra.mxu0 0.0
        %996 = vmatprep.subr.mxu0 0.0
        %997 = vmatpush2.msra.mxu0 0.0
        %998 = vmatprep.subr.mxu0 0.0
        %999 = vmatpush2.msra.mxu0 0.0
        %1000 = vmatprep.subr.mxu0 0.0
        %1001 = vmatpush2.msra.mxu0 0.0
        %1002 = vmatprep.subr.mxu0 0.0
        %1003 = vmatpush2.msra.mxu0 0.0
        %1004 = vmatprep.mubr.f32.mxu0 0.0
        %1005 = vmatmul.mubr.f32.gmra.mxu0 %v438
        %v1006 = vpop.f32.mrf.mxu0
        %v1007 = vadd.f32 0.0, %v1006
        %v1008 = vpop.f32.mrf.mxu0
        %v1009 = vadd.f32 0.0, %v1008
        %1010 = vmatprep.mubr.f32.mxu0 0.0
        %1011 = vmatmul.mubr.f32.gmra.mxu0 %v441
        %v1012 = vpop.f32.mrf.mxu0
        %v1013 = vadd.f32 0.0, %v1012
        %v1014 = vpop.f32.mrf.mxu0
        %v1015 = vadd.f32 0.0, %v1014
        %1016 = vmatprep.mubr.f32.mxu0 0.0
        %1017 = vmatmul.mubr.f32.gmra.mxu0 %v444
        %v1018 = vpop.f32.mrf.mxu0
        %v1019 = vadd.f32 0.0, %v1018
        %v1020 = vpop.f32.mrf.mxu0
        %v1021 = vadd.f32 0.0, %v1020
        %1022 = vmatprep.mubr.f32.mxu0 0.0
        %1023 = vmatmul.mubr.f32.gmra.mxu0 %v447
        %v1024 = vpop.f32.mrf.mxu0
        %v1025 = vadd.f32 0.0, %v1024
        %v1026 = vpop.f32.mrf.mxu0
        %v1027 = vadd.f32 0.0, %v1026
        %1028 = vmatprep.mubr.f32.mxu0 0.0
        %1029 = vmatmul.mubr.f32.gmra.mxu0 %v450
        %v1030 = vpop.f32.mrf.mxu0
        %v1031 = vadd.f32 0.0, %v1030
        %v1032 = vpop.f32.mrf.mxu0
        %v1033 = vadd.f32 0.0, %v1032
        %1034 = vmatprep.mubr.f32.mxu0 0.0
        %1035 = vmatmul.mubr.f32.gmra.mxu0 %v453
        %v1036 = vpop.f32.mrf.mxu0
        %v1037 = vadd.f32 0.0, %v1036
        %v1038 = vpop.f32.mrf.mxu0
        %v1039 = vadd.f32 0.0, %v1038
        %1040 = vmatprep.mubr.f32.mxu0 0.0
        %1041 = vmatmul.mubr.f32.gmra.mxu0 %v456
        %v1042 = vpop.f32.mrf.mxu0
        %v1043 = vadd.f32 0.0, %v1042
        %v1044 = vpop.f32.mrf.mxu0
        %v1045 = vadd.f32 0.0, %v1044
        %1046 = vmatprep.mubr.f32.mxu0 0.0
        %1047 = vmatmul.mubr.f32.gmra.mxu0 %v459
        %v1048 = vpop.f32.mrf.mxu0
        %v1049 = vadd.f32 0.0, %v1048
        %v1050 = vpop.f32.mrf.mxu0
        %v1051 = vadd.f32 0.0, %v1050
        %1052 = vmatprep.mubr.f32.mxu0 0.0
        %1053 = vmatmul.mubr.f32.gmra.mxu0 %v462
        %v1054 = vpop.f32.mrf.mxu0
        %v1055 = vadd.f32 0.0, %v1054
        %v1056 = vpop.f32.mrf.mxu0
        %v1057 = vadd.f32 0.0, %v1056
        %1058 = vdwg.mxu0
        %1059 = vmatprep.subr.mxu0 0.0
        %1060 = vmatpush1.msra.mxu0 0.0
        %1061 = vmatprep.subr.mxu0 0.0
        %1062 = vmatpush1.msra.mxu0 0.0
        %1063 = vmatprep.subr.mxu0 0.0
        %1064 = vmatpush1.msra.mxu0 0.0
        %1065 = vmatprep.subr.mxu0 0.0
        %1066 = vmatpush1.msra.mxu0 0.0
        %1067 = vmatprep.subr.mxu0 0.0
        %1068 = vmatpush1.msra.mxu0 0.0
        %1069 = vmatprep.subr.mxu0 0.0
        %1070 = vmatpush1.msra.mxu0 0.0
        %1071 = vmatprep.subr.mxu0 0.0
        %1072 = vmatpush1.msra.mxu0 0.0
        %1073 = vmatprep.subr.mxu0 0.0
        %1074 = vmatpush1.msra.mxu0 0.0
        %1075 = vmatprep.subr.mxu0 0.0
        %1076 = vmatpush1.msra.mxu0 0.0
        %1077 = vmatprep.subr.mxu0 0.0
        %1078 = vmatpush1.msra.mxu0 0.0
        %1079 = vmatprep.subr.mxu0 0.0
        %1080 = vmatpush1.msra.mxu0 0.0
        %1081 = vmatprep.subr.mxu0 0.0
        %1082 = vmatpush1.msra.mxu0 0.0
        %1083 = vmatprep.subr.mxu0 0.0
        %1084 = vmatpush1.msra.mxu0 0.0
        %1085 = vmatprep.subr.mxu0 %v413
        %1086 = vmatpush1.msra.mxu0 %v412
        %1087 = vmatprep.subr.mxu0 %v388
        %1088 = vmatpush1.msra.mxu0 %v387
        %1089 = vmatprep.subr.mxu0 %v363
        %1090 = vmatpush1.msra.mxu0 %v362
        %1091 = vmatprep.subr.mxu0 0.0
        %1092 = vmatpush2.msra.mxu0 0.0
        %1093 = vmatprep.subr.mxu0 0.0
        %1094 = vmatpush2.msra.mxu0 0.0
        %1095 = vmatprep.subr.mxu0 0.0
        %1096 = vmatpush2.msra.mxu0 0.0
        %1097 = vmatprep.subr.mxu0 0.0
        %1098 = vmatpush2.msra.mxu0 0.0
        %1099 = vmatprep.subr.mxu0 0.0
        %1100 = vmatpush2.msra.mxu0 0.0
        %1101 = vmatprep.subr.mxu0 0.0
        %1102 = vmatpush2.msra.mxu0 0.0
        %1103 = vmatprep.subr.mxu0 0.0
        %1104 = vmatpush2.msra.mxu0 0.0
        %1105 = vmatprep.subr.mxu0 0.0
        %1106 = vmatpush2.msra.mxu0 0.0
        %1107 = vmatprep.subr.mxu0 0.0
        %1108 = vmatpush2.msra.mxu0 0.0
        %1109 = vmatprep.subr.mxu0 0.0
        %1110 = vmatpush2.msra.mxu0 0.0
        %1111 = vmatprep.subr.mxu0 0.0
        %1112 = vmatpush2.msra.mxu0 0.0
        %1113 = vmatprep.subr.mxu0 0.0
        %1114 = vmatpush2.msra.mxu0 0.0
        %1115 = vmatprep.subr.mxu0 0.0
        %1116 = vmatpush2.msra.mxu0 0.0
        %1117 = vmatprep.subr.mxu0 0.0
        %1118 = vmatpush2.msra.mxu0 0.0
        %1119 = vmatprep.subr.mxu0 0.0
        %1120 = vmatpush2.msra.mxu0 0.0
        %1121 = vmatprep.subr.mxu0 0.0
        %1122 = vmatpush2.msra.mxu0 0.0
        %1123 = vmatprep.mubr.f32.mxu0 0.0
        %1124 = vmatmul.mubr.f32.gmra.mxu0 %v438
        %v1125 = vpop.f32.mrf.mxu0
        %v1126 = vadd.f32 0.0, %v1125
        %v1127 = vpop.f32.mrf.mxu0
        %v1128 = vadd.f32 0.0, %v1127
        %1129 = vmatprep.mubr.f32.mxu0 0.0
        %1130 = vmatmul.mubr.f32.gmra.mxu0 %v441
        %v1131 = vpop.f32.mrf.mxu0
        %v1132 = vadd.f32 0.0, %v1131
        %v1133 = vpop.f32.mrf.mxu0
        %v1134 = vadd.f32 0.0, %v1133
        %1135 = vmatprep.mubr.f32.mxu0 0.0
        %1136 = vmatmul.mubr.f32.gmra.mxu0 %v444
        %v1137 = vpop.f32.mrf.mxu0
        %v1138 = vadd.f32 0.0, %v1137
        %v1139 = vpop.f32.mrf.mxu0
        %v1140 = vadd.f32 0.0, %v1139
        %1141 = vmatprep.mubr.f32.mxu0 0.0
        %1142 = vmatmul.mubr.f32.gmra.mxu0 %v447
        %v1143 = vpop.f32.mrf.mxu0
        %v1144 = vadd.f32 0.0, %v1143
        %v1145 = vpop.f32.mrf.mxu0
        %v1146 = vadd.f32 0.0, %v1145
        %1147 = vmatprep.mubr.f32.mxu0 0.0
        %1148 = vmatmul.mubr.f32.gmra.mxu0 %v450
        %v1149 = vpop.f32.mrf.mxu0
        %v1150 = vadd.f32 0.0, %v1149
        %v1151 = vpop.f32.mrf.mxu0
        %v1152 = vadd.f32 0.0, %v1151
        %1153 = vmatprep.mubr.f32.mxu0 0.0
        %1154 = vmatmul.mubr.f32.gmra.mxu0 %v453
        %v1155 = vpop.f32.mrf.mxu0
        %v1156 = vadd.f32 0.0, %v1155
        %v1157 = vpop.f32.mrf.mxu0
        %v1158 = vadd.f32 0.0, %v1157
        %1159 = vmatprep.mubr.f32.mxu0 0.0
        %1160 = vmatmul.mubr.f32.gmra.mxu0 %v456
        %v1161 = vpop.f32.mrf.mxu0
        %v1162 = vadd.f32 0.0, %v1161
        %v1163 = vpop.f32.mrf.mxu0
        %v1164 = vadd.f32 0.0, %v1163
        %1165 = vmatprep.mubr.f32.mxu0 0.0
        %1166 = vmatmul.mubr.f32.gmra.mxu0 %v459
        %v1167 = vpop.f32.mrf.mxu0
        %v1168 = vadd.f32 0.0, %v1167
        %v1169 = vpop.f32.mrf.mxu0
        %v1170 = vadd.f32 0.0, %v1169
        %1171 = vmatprep.mubr.f32.mxu0 0.0
        %1172 = vmatmul.mubr.f32.gmra.mxu0 %v462
        %v1173 = vpop.f32.mrf.mxu0
        %v1174 = vadd.f32 0.0, %v1173
        %v1175 = vpop.f32.mrf.mxu0
        %v1176 = vadd.f32 0.0, %v1175
        %1177 = vdwg.mxu0
        %1178 = vmatprep.subr.mxu0 0.0
        %1179 = vmatpush1.msra.mxu0 0.0
        %1180 = vmatprep.subr.mxu0 0.0
        %1181 = vmatpush1.msra.mxu0 0.0
        %1182 = vmatprep.subr.mxu0 0.0
        %1183 = vmatpush1.msra.mxu0 0.0
        %1184 = vmatprep.subr.mxu0 0.0
        %1185 = vmatpush1.msra.mxu0 0.0
        %1186 = vmatprep.subr.mxu0 0.0
        %1187 = vmatpush1.msra.mxu0 0.0
        %1188 = vmatprep.subr.mxu0 0.0
        %1189 = vmatpush1.msra.mxu0 0.0
        %1190 = vmatprep.subr.mxu0 0.0
        %1191 = vmatpush1.msra.mxu0 0.0
        %1192 = vmatprep.subr.mxu0 0.0
        %1193 = vmatpush1.msra.mxu0 0.0
        %1194 = vmatprep.subr.mxu0 0.0
        %1195 = vmatpush1.msra.mxu0 0.0
        %1196 = vmatprep.subr.mxu0 0.0
        %1197 = vmatpush1.msra.mxu0 0.0
        %1198 = vmatprep.subr.mxu0 0.0
        %1199 = vmatpush1.msra.mxu0 0.0
        %1200 = vmatprep.subr.mxu0 0.0
        %1201 = vmatpush1.msra.mxu0 0.0
        %1202 = vmatprep.subr.mxu0 0.0
        %1203 = vmatpush1.msra.mxu0 0.0
        %1204 = vmatprep.subr.mxu0 %v415
        %1205 = vmatpush1.msra.mxu0 %v414
        %1206 = vmatprep.subr.mxu0 %v390
        %1207 = vmatpush1.msra.mxu0 %v389
        %1208 = vmatprep.subr.mxu0 %v365
        %1209 = vmatpush1.msra.mxu0 %v364
        %1210 = vmatprep.subr.mxu0 0.0
        %1211 = vmatpush2.msra.mxu0 0.0
        %1212 = vmatprep.subr.mxu0 0.0
        %1213 = vmatpush2.msra.mxu0 0.0
        %1214 = vmatprep.subr.mxu0 0.0
        %1215 = vmatpush2.msra.mxu0 0.0
        %1216 = vmatprep.subr.mxu0 0.0
        %1217 = vmatpush2.msra.mxu0 0.0
        %1218 = vmatprep.subr.mxu0 0.0
        %1219 = vmatpush2.msra.mxu0 0.0
        %1220 = vmatprep.subr.mxu0 0.0
        %1221 = vmatpush2.msra.mxu0 0.0
        %1222 = vmatprep.subr.mxu0 0.0
        %1223 = vmatpush2.msra.mxu0 0.0
        %1224 = vmatprep.subr.mxu0 0.0
        %1225 = vmatpush2.msra.mxu0 0.0
        %1226 = vmatprep.subr.mxu0 0.0
        %1227 = vmatpush2.msra.mxu0 0.0
        %1228 = vmatprep.subr.mxu0 0.0
        %1229 = vmatpush2.msra.mxu0 0.0
        %1230 = vmatprep.subr.mxu0 0.0
        %1231 = vmatpush2.msra.mxu0 0.0
        %1232 = vmatprep.subr.mxu0 0.0
        %1233 = vmatpush2.msra.mxu0 0.0
        %1234 = vmatprep.subr.mxu0 0.0
        %1235 = vmatpush2.msra.mxu0 0.0
        %1236 = vmatprep.subr.mxu0 0.0
        %1237 = vmatpush2.msra.mxu0 0.0
        %1238 = vmatprep.subr.mxu0 0.0
        %1239 = vmatpush2.msra.mxu0 0.0
        %1240 = vmatprep.subr.mxu0 0.0
        %1241 = vmatpush2.msra.mxu0 0.0
        %1242 = vmatprep.mubr.f32.mxu0 0.0
        %1243 = vmatmul.mubr.f32.gmra.mxu0 %v438
        %v1244 = vpop.f32.mrf.mxu0
        %v1245 = vadd.f32 0.0, %v1244
        %v1246 = vpop.f32.mrf.mxu0
        %v1247 = vadd.f32 0.0, %v1246
        %1248 = vmatprep.mubr.f32.mxu0 0.0
        %1249 = vmatmul.mubr.f32.gmra.mxu0 %v441
        %v1250 = vpop.f32.mrf.mxu0
        %v1251 = vadd.f32 0.0, %v1250
        %v1252 = vpop.f32.mrf.mxu0
        %v1253 = vadd.f32 0.0, %v1252
        %1254 = vmatprep.mubr.f32.mxu0 0.0
        %1255 = vmatmul.mubr.f32.gmra.mxu0 %v444
        %v1256 = vpop.f32.mrf.mxu0
        %v1257 = vadd.f32 0.0, %v1256
        %v1258 = vpop.f32.mrf.mxu0
        %v1259 = vadd.f32 0.0, %v1258
        %1260 = vmatprep.mubr.f32.mxu0 0.0
        %1261 = vmatmul.mubr.f32.gmra.mxu0 %v447
        %v1262 = vpop.f32.mrf.mxu0
        %v1263 = vadd.f32 0.0, %v1262
        %v1264 = vpop.f32.mrf.mxu0
        %v1265 = vadd.f32 0.0, %v1264
        %1266 = vmatprep.mubr.f32.mxu0 0.0
        %1267 = vmatmul.mubr.f32.gmra.mxu0 %v450
        %v1268 = vpop.f32.mrf.mxu0
        %v1269 = vadd.f32 0.0, %v1268
        %v1270 = vpop.f32.mrf.mxu0
        %v1271 = vadd.f32 0.0, %v1270
        %1272 = vmatprep.mubr.f32.mxu0 0.0
        %1273 = vmatmul.mubr.f32.gmra.mxu0 %v453
        %v1274 = vpop.f32.mrf.mxu0
        %v1275 = vadd.f32 0.0, %v1274
        %v1276 = vpop.f32.mrf.mxu0
        %v1277 = vadd.f32 0.0, %v1276
        %1278 = vmatprep.mubr.f32.mxu0 0.0
        %1279 = vmatmul.mubr.f32.gmra.mxu0 %v456
        %v1280 = vpop.f32.mrf.mxu0
        %v1281 = vadd.f32 0.0, %v1280
        %v1282 = vpop.f32.mrf.mxu0
        %v1283 = vadd.f32 0.0, %v1282
        %1284 = vmatprep.mubr.f32.mxu0 0.0
        %1285 = vmatmul.mubr.f32.gmra.mxu0 %v459
        %v1286 = vpop.f32.mrf.mxu0
        %v1287 = vadd.f32 0.0, %v1286
        %v1288 = vpop.f32.mrf.mxu0
        %v1289 = vadd.f32 0.0, %v1288
        %1290 = vmatprep.mubr.f32.mxu0 0.0
        %1291 = vmatmul.mubr.f32.gmra.mxu0 %v462
        %v1292 = vpop.f32.mrf.mxu0
        %v1293 = vadd.f32 0.0, %v1292
        %v1294 = vpop.f32.mrf.mxu0
        %v1295 = vadd.f32 0.0, %v1294
        %1296 = vdwg.mxu0
        %1297 = vmatprep.subr.mxu0 0.0
        %1298 = vmatpush1.msra.mxu0 0.0
        %1299 = vmatprep.subr.mxu0 0.0
        %1300 = vmatpush1.msra.mxu0 0.0
        %1301 = vmatprep.subr.mxu0 0.0
        %1302 = vmatpush1.msra.mxu0 0.0
        %1303 = vmatprep.subr.mxu0 0.0
        %1304 = vmatpush1.msra.mxu0 0.0
        %1305 = vmatprep.subr.mxu0 0.0
        %1306 = vmatpush1.msra.mxu0 0.0
        %1307 = vmatprep.subr.mxu0 0.0
        %1308 = vmatpush1.msra.mxu0 0.0
        %1309 = vmatprep.subr.mxu0 0.0
        %1310 = vmatpush1.msra.mxu0 0.0
        %1311 = vmatprep.subr.mxu0 0.0
        %1312 = vmatpush1.msra.mxu0 0.0
        %1313 = vmatprep.subr.mxu0 0.0
        %1314 = vmatpush1.msra.mxu0 0.0
        %1315 = vmatprep.subr.mxu0 0.0
        %1316 = vmatpush1.msra.mxu0 0.0
        %1317 = vmatprep.subr.mxu0 0.0
        %1318 = vmatpush1.msra.mxu0 0.0
        %1319 = vmatprep.subr.mxu0 0.0
        %1320 = vmatpush1.msra.mxu0 0.0
        %1321 = vmatprep.subr.mxu0 0.0
        %1322 = vmatpush1.msra.mxu0 0.0
        %1323 = vmatprep.subr.mxu0 %v417
        %1324 = vmatpush1.msra.mxu0 %v416
        %1325 = vmatprep.subr.mxu0 %v392
        %1326 = vmatpush1.msra.mxu0 %v391
        %1327 = vmatprep.subr.mxu0 %v367
        %1328 = vmatpush1.msra.mxu0 %v366
        %1329 = vmatprep.subr.mxu0 0.0
        %1330 = vmatpush2.msra.mxu0 0.0
        %1331 = vmatprep.subr.mxu0 0.0
        %1332 = vmatpush2.msra.mxu0 0.0
        %1333 = vmatprep.subr.mxu0 0.0
        %1334 = vmatpush2.msra.mxu0 0.0
        %1335 = vmatprep.subr.mxu0 0.0
        %1336 = vmatpush2.msra.mxu0 0.0
        %1337 = vmatprep.subr.mxu0 0.0
        %1338 = vmatpush2.msra.mxu0 0.0
        %1339 = vmatprep.subr.mxu0 0.0
        %1340 = vmatpush2.msra.mxu0 0.0
        %1341 = vmatprep.subr.mxu0 0.0
        %1342 = vmatpush2.msra.mxu0 0.0
        %1343 = vmatprep.subr.mxu0 0.0
        %1344 = vmatpush2.msra.mxu0 0.0
        %1345 = vmatprep.subr.mxu0 0.0
        %1346 = vmatpush2.msra.mxu0 0.0
        %1347 = vmatprep.subr.mxu0 0.0
        %1348 = vmatpush2.msra.mxu0 0.0
        %1349 = vmatprep.subr.mxu0 0.0
        %1350 = vmatpush2.msra.mxu0 0.0
        %1351 = vmatprep.subr.mxu0 0.0
        %1352 = vmatpush2.msra.mxu0 0.0
        %1353 = vmatprep.subr.mxu0 0.0
        %1354 = vmatpush2.msra.mxu0 0.0
        %1355 = vmatprep.subr.mxu0 0.0
        %1356 = vmatpush2.msra.mxu0 0.0
        %1357 = vmatprep.subr.mxu0 0.0
        %1358 = vmatpush2.msra.mxu0 0.0
        %1359 = vmatprep.subr.mxu0 0.0
        %1360 = vmatpush2.msra.mxu0 0.0
        %1361 = vmatprep.mubr.f32.mxu0 0.0
        %1362 = vmatmul.mubr.f32.gmra.mxu0 %v438
        %v1363 = vpop.f32.mrf.mxu0
        %v1364 = vadd.f32 0.0, %v1363
        %v1365 = vpop.f32.mrf.mxu0
        %v1366 = vadd.f32 0.0, %v1365
        %1367 = vmatprep.mubr.f32.mxu0 0.0
        %1368 = vmatmul.mubr.f32.gmra.mxu0 %v441
        %v1369 = vpop.f32.mrf.mxu0
        %v1370 = vadd.f32 0.0, %v1369
        %v1371 = vpop.f32.mrf.mxu0
        %v1372 = vadd.f32 0.0, %v1371
        %1373 = vmatprep.mubr.f32.mxu0 0.0
        %1374 = vmatmul.mubr.f32.gmra.mxu0 %v444
        %v1375 = vpop.f32.mrf.mxu0
        %v1376 = vadd.f32 0.0, %v1375
        %v1377 = vpop.f32.mrf.mxu0
        %v1378 = vadd.f32 0.0, %v1377
        %1379 = vmatprep.mubr.f32.mxu0 0.0
        %1380 = vmatmul.mubr.f32.gmra.mxu0 %v447
        %v1381 = vpop.f32.mrf.mxu0
        %v1382 = vadd.f32 0.0, %v1381
        %v1383 = vpop.f32.mrf.mxu0
        %v1384 = vadd.f32 0.0, %v1383
        %1385 = vmatprep.mubr.f32.mxu0 0.0
        %1386 = vmatmul.mubr.f32.gmra.mxu0 %v450
        %v1387 = vpop.f32.mrf.mxu0
        %v1388 = vadd.f32 0.0, %v1387
        %v1389 = vpop.f32.mrf.mxu0
        %v1390 = vadd.f32 0.0, %v1389
        %1391 = vmatprep.mubr.f32.mxu0 0.0
        %1392 = vmatmul.mubr.f32.gmra.mxu0 %v453
        %v1393 = vpop.f32.mrf.mxu0
        %v1394 = vadd.f32 0.0, %v1393
        %v1395 = vpop.f32.mrf.mxu0
        %v1396 = vadd.f32 0.0, %v1395
        %1397 = vmatprep.mubr.f32.mxu0 0.0
        %1398 = vmatmul.mubr.f32.gmra.mxu0 %v456
        %v1399 = vpop.f32.mrf.mxu0
        %v1400 = vadd.f32 0.0, %v1399
        %v1401 = vpop.f32.mrf.mxu0
        %v1402 = vadd.f32 0.0, %v1401
        %1403 = vmatprep.mubr.f32.mxu0 0.0
        %1404 = vmatmul.mubr.f32.gmra.mxu0 %v459
        %v1405 = vpop.f32.mrf.mxu0
        %v1406 = vadd.f32 0.0, %v1405
        %v1407 = vpop.f32.mrf.mxu0
        %v1408 = vadd.f32 0.0, %v1407
        %1409 = vmatprep.mubr.f32.mxu0 0.0
        %1410 = vmatmul.mubr.f32.gmra.mxu0 %v462
        %v1411 = vpop.f32.mrf.mxu0
        %v1412 = vadd.f32 0.0, %v1411
        %v1413 = vpop.f32.mrf.mxu0
        %v1414 = vadd.f32 0.0, %v1413
        %1415 = vdwg.mxu0
        %1416 = vmatprep.subr.mxu0 0.0
        %1417 = vmatpush1.msra.mxu0 0.0
        %1418 = vmatprep.subr.mxu0 0.0
        %1419 = vmatpush1.msra.mxu0 0.0
        %1420 = vmatprep.subr.mxu0 0.0
        %1421 = vmatpush1.msra.mxu0 0.0
        %1422 = vmatprep.subr.mxu0 0.0
        %1423 = vmatpush1.msra.mxu0 0.0
        %1424 = vmatprep.subr.mxu0 0.0
        %1425 = vmatpush1.msra.mxu0 0.0
        %1426 = vmatprep.subr.mxu0 0.0
        %1427 = vmatpush1.msra.mxu0 0.0
        %1428 = vmatprep.subr.mxu0 0.0
        %1429 = vmatpush1.msra.mxu0 0.0
        %1430 = vmatprep.subr.mxu0 0.0
        %1431 = vmatpush1.msra.mxu0 0.0
        %1432 = vmatprep.subr.mxu0 0.0
        %1433 = vmatpush1.msra.mxu0 0.0
        %1434 = vmatprep.subr.mxu0 0.0
        %1435 = vmatpush1.msra.mxu0 0.0
        %1436 = vmatprep.subr.mxu0 0.0
        %1437 = vmatpush1.msra.mxu0 0.0
        %1438 = vmatprep.subr.mxu0 0.0
        %1439 = vmatpush1.msra.mxu0 0.0
        %1440 = vmatprep.subr.mxu0 0.0
        %1441 = vmatpush1.msra.mxu0 0.0
        %1442 = vmatprep.subr.mxu0 %v419
        %1443 = vmatpush1.msra.mxu0 %v418
        %1444 = vmatprep.subr.mxu0 %v394
        %1445 = vmatpush1.msra.mxu0 %v393
        %1446 = vmatprep.subr.mxu0 %v369
        %1447 = vmatpush1.msra.mxu0 %v368
        %1448 = vmatprep.subr.mxu0 0.0
        %1449 = vmatpush2.msra.mxu0 0.0
        %1450 = vmatprep.subr.mxu0 0.0
        %1451 = vmatpush2.msra.mxu0 0.0
        %1452 = vmatprep.subr.mxu0 0.0
        %1453 = vmatpush2.msra.mxu0 0.0
        %1454 = vmatprep.subr.mxu0 0.0
        %1455 = vmatpush2.msra.mxu0 0.0
        %1456 = vmatprep.subr.mxu0 0.0
        %1457 = vmatpush2.msra.mxu0 0.0
        %1458 = vmatprep.subr.mxu0 0.0
        %1459 = vmatpush2.msra.mxu0 0.0
        %1460 = vmatprep.subr.mxu0 0.0
        %1461 = vmatpush2.msra.mxu0 0.0
        %1462 = vmatprep.subr.mxu0 0.0
        %1463 = vmatpush2.msra.mxu0 0.0
        %1464 = vmatprep.subr.mxu0 0.0
        %1465 = vmatpush2.msra.mxu0 0.0
        %1466 = vmatprep.subr.mxu0 0.0
        %1467 = vmatpush2.msra.mxu0 0.0
        %1468 = vmatprep.subr.mxu0 0.0
        %1469 = vmatpush2.msra.mxu0 0.0
        %1470 = vmatprep.subr.mxu0 0.0
        %1471 = vmatpush2.msra.mxu0 0.0
        %1472 = vmatprep.subr.mxu0 0.0
        %1473 = vmatpush2.msra.mxu0 0.0
        %1474 = vmatprep.subr.mxu0 0.0
        %1475 = vmatpush2.msra.mxu0 0.0
        %1476 = vmatprep.subr.mxu0 0.0
        %1477 = vmatpush2.msra.mxu0 0.0
        %1478 = vmatprep.subr.mxu0 0.0
        %1479 = vmatpush2.msra.mxu0 0.0
        %1480 = vmatprep.mubr.f32.mxu0 0.0
        %1481 = vmatmul.mubr.f32.gmra.mxu0 %v438
        %v1482 = vpop.f32.mrf.mxu0
        %v1483 = vadd.f32 0.0, %v1482
        %v1484 = vpop.f32.mrf.mxu0
        %v1485 = vadd.f32 0.0, %v1484
        %1486 = vmatprep.mubr.f32.mxu0 0.0
        %1487 = vmatmul.mubr.f32.gmra.mxu0 %v441
        %v1488 = vpop.f32.mrf.mxu0
        %v1489 = vadd.f32 0.0, %v1488
        %v1490 = vpop.f32.mrf.mxu0
        %v1491 = vadd.f32 0.0, %v1490
        %1492 = vmatprep.mubr.f32.mxu0 0.0
        %1493 = vmatmul.mubr.f32.gmra.mxu0 %v444
        %v1494 = vpop.f32.mrf.mxu0
        %v1495 = vadd.f32 0.0, %v1494
        %v1496 = vpop.f32.mrf.mxu0
        %v1497 = vadd.f32 0.0, %v1496
        %1498 = vmatprep.mubr.f32.mxu0 0.0
        %1499 = vmatmul.mubr.f32.gmra.mxu0 %v447
        %v1500 = vpop.f32.mrf.mxu0
        %v1501 = vadd.f32 0.0, %v1500
        %v1502 = vpop.f32.mrf.mxu0
        %v1503 = vadd.f32 0.0, %v1502
        %1504 = vmatprep.mubr.f32.mxu0 0.0
        %1505 = vmatmul.mubr.f32.gmra.mxu0 %v450
        %v1506 = vpop.f32.mrf.mxu0
        %v1507 = vadd.f32 0.0, %v1506
        %v1508 = vpop.f32.mrf.mxu0
        %v1509 = vadd.f32 0.0, %v1508
        %1510 = vmatprep.mubr.f32.mxu0 0.0
        %1511 = vmatmul.mubr.f32.gmra.mxu0 %v453
        %v1512 = vpop.f32.mrf.mxu0
        %v1513 = vadd.f32 0.0, %v1512
        %v1514 = vpop.f32.mrf.mxu0
        %v1515 = vadd.f32 0.0, %v1514
        %1516 = vmatprep.mubr.f32.mxu0 0.0
        %1517 = vmatmul.mubr.f32.gmra.mxu0 %v456
        %v1518 = vpop.f32.mrf.mxu0
        %v1519 = vadd.f32 0.0, %v1518
        %v1520 = vpop.f32.mrf.mxu0
        %v1521 = vadd.f32 0.0, %v1520
        %1522 = vmatprep.mubr.f32.mxu0 0.0
        %1523 = vmatmul.mubr.f32.gmra.mxu0 %v459
        %v1524 = vpop.f32.mrf.mxu0
        %v1525 = vadd.f32 0.0, %v1524
        %v1526 = vpop.f32.mrf.mxu0
        %v1527 = vadd.f32 0.0, %v1526
        %1528 = vmatprep.mubr.f32.mxu0 0.0
        %1529 = vmatmul.mubr.f32.gmra.mxu0 %v462
        %v1530 = vpop.f32.mrf.mxu0
        %v1531 = vadd.f32 0.0, %v1530
        %v1532 = vpop.f32.mrf.mxu0
        %v1533 = vadd.f32 0.0, %v1532
        %1534 = vdwg.mxu0
        %1535 = vmatprep.subr.mxu0 0.0
        %1536 = vmatpush1.msra.mxu0 0.0
        %1537 = vmatprep.subr.mxu0 0.0
        %1538 = vmatpush1.msra.mxu0 0.0
        %1539 = vmatprep.subr.mxu0 0.0
        %1540 = vmatpush1.msra.mxu0 0.0
        %1541 = vmatprep.subr.mxu0 0.0
        %1542 = vmatpush1.msra.mxu0 0.0
        %1543 = vmatprep.subr.mxu0 0.0
        %1544 = vmatpush1.msra.mxu0 0.0
        %1545 = vmatprep.subr.mxu0 0.0
        %1546 = vmatpush1.msra.mxu0 0.0
        %1547 = vmatprep.subr.mxu0 0.0
        %1548 = vmatpush1.msra.mxu0 0.0
        %1549 = vmatprep.subr.mxu0 0.0
        %1550 = vmatpush1.msra.mxu0 0.0
        %1551 = vmatprep.subr.mxu0 0.0
        %1552 = vmatpush1.msra.mxu0 0.0
        %1553 = vmatprep.subr.mxu0 0.0
        %1554 = vmatpush1.msra.mxu0 0.0
        %1555 = vmatprep.subr.mxu0 0.0
        %1556 = vmatpush1.msra.mxu0 0.0
        %1557 = vmatprep.subr.mxu0 0.0
        %1558 = vmatpush1.msra.mxu0 0.0
        %1559 = vmatprep.subr.mxu0 0.0
        %1560 = vmatpush1.msra.mxu0 0.0
        %1561 = vmatprep.subr.mxu0 %v421
        %1562 = vmatpush1.msra.mxu0 %v420
        %1563 = vmatprep.subr.mxu0 %v396
        %1564 = vmatpush1.msra.mxu0 %v395
        %1565 = vmatprep.subr.mxu0 %v371
        %1566 = vmatpush1.msra.mxu0 %v370
        %1567 = vmatprep.subr.mxu0 0.0
        %1568 = vmatpush2.msra.mxu0 0.0
        %1569 = vmatprep.subr.mxu0 0.0
        %1570 = vmatpush2.msra.mxu0 0.0
        %1571 = vmatprep.subr.mxu0 0.0
        %1572 = vmatpush2.msra.mxu0 0.0
        %1573 = vmatprep.subr.mxu0 0.0
        %1574 = vmatpush2.msra.mxu0 0.0
        %1575 = vmatprep.subr.mxu0 0.0
        %1576 = vmatpush2.msra.mxu0 0.0
        %1577 = vmatprep.subr.mxu0 0.0
        %1578 = vmatpush2.msra.mxu0 0.0
        %1579 = vmatprep.subr.mxu0 0.0
        %1580 = vmatpush2.msra.mxu0 0.0
        %1581 = vmatprep.subr.mxu0 0.0
        %1582 = vmatpush2.msra.mxu0 0.0
        %1583 = vmatprep.subr.mxu0 0.0
        %1584 = vmatpush2.msra.mxu0 0.0
        %1585 = vmatprep.subr.mxu0 0.0
        %1586 = vmatpush2.msra.mxu0 0.0
        %1587 = vmatprep.subr.mxu0 0.0
        %1588 = vmatpush2.msra.mxu0 0.0
        %1589 = vmatprep.subr.mxu0 0.0
        %1590 = vmatpush2.msra.mxu0 0.0
        %1591 = vmatprep.subr.mxu0 0.0
        %1592 = vmatpush2.msra.mxu0 0.0
        %1593 = vmatprep.subr.mxu0 0.0
        %1594 = vmatpush2.msra.mxu0 0.0
        %1595 = vmatprep.subr.mxu0 0.0
        %1596 = vmatpush2.msra.mxu0 0.0
        %1597 = vmatprep.subr.mxu0 0.0
        %1598 = vmatpush2.msra.mxu0 0.0
        %1599 = vmatprep.mubr.f32.mxu0 0.0
        %1600 = vmatmul.mubr.f32.gmra.mxu0 %v438
        %v1601 = vpop.f32.mrf.mxu0
        %v1602 = vadd.f32 0.0, %v1601
        %v1603 = vpop.f32.mrf.mxu0
        %v1604 = vadd.f32 0.0, %v1603
        %1605 = vmatprep.mubr.f32.mxu0 0.0
        %1606 = vmatmul.mubr.f32.gmra.mxu0 %v441
        %v1607 = vpop.f32.mrf.mxu0
        %v1608 = vadd.f32 0.0, %v1607
        %v1609 = vpop.f32.mrf.mxu0
        %v1610 = vadd.f32 0.0, %v1609
        %1611 = vmatprep.mubr.f32.mxu0 0.0
        %1612 = vmatmul.mubr.f32.gmra.mxu0 %v444
        %v1613 = vpop.f32.mrf.mxu0
        %v1614 = vadd.f32 0.0, %v1613
        %v1615 = vpop.f32.mrf.mxu0
        %v1616 = vadd.f32 0.0, %v1615
        %1617 = vmatprep.mubr.f32.mxu0 0.0
        %1618 = vmatmul.mubr.f32.gmra.mxu0 %v447
        %v1619 = vpop.f32.mrf.mxu0
        %v1620 = vadd.f32 0.0, %v1619
        %v1621 = vpop.f32.mrf.mxu0
        %v1622 = vadd.f32 0.0, %v1621
        %1623 = vmatprep.mubr.f32.mxu0 0.0
        %1624 = vmatmul.mubr.f32.gmra.mxu0 %v450
        %v1625 = vpop.f32.mrf.mxu0
        %v1626 = vadd.f32 0.0, %v1625
        %v1627 = vpop.f32.mrf.mxu0
        %v1628 = vadd.f32 0.0, %v1627
        %1629 = vmatprep.mubr.f32.mxu0 0.0
        %1630 = vmatmul.mubr.f32.gmra.mxu0 %v453
        %v1631 = vpop.f32.mrf.mxu0
        %v1632 = vadd.f32 0.0, %v1631
        %v1633 = vpop.f32.mrf.mxu0
        %v1634 = vadd.f32 0.0, %v1633
        %1635 = vmatprep.mubr.f32.mxu0 0.0
        %1636 = vmatmul.mubr.f32.gmra.mxu0 %v456
        %v1637 = vpop.f32.mrf.mxu0
        %v1638 = vadd.f32 0.0, %v1637
        %v1639 = vpop.f32.mrf.mxu0
        %v1640 = vadd.f32 0.0, %v1639
        %1641 = vmatprep.mubr.f32.mxu0 0.0
        %1642 = vmatmul.mubr.f32.gmra.mxu0 %v459
        %v1643 = vpop.f32.mrf.mxu0
        %v1644 = vadd.f32 0.0, %v1643
        %v1645 = vpop.f32.mrf.mxu0
        %v1646 = vadd.f32 0.0, %v1645
        %1647 = vmatprep.mubr.f32.mxu0 0.0
        %1648 = vmatmul.mubr.f32.gmra.mxu0 %v462
        %v1649 = vpop.f32.mrf.mxu0
        %v1650 = vadd.f32 0.0, %v1649
        %v1651 = vpop.f32.mrf.mxu0
        %v1652 = vadd.f32 0.0, %v1651
        %1653 = vdwg.mxu0
        %1654 = vmatprep.subr.mxu0 0.0
        %1655 = vmatpush1.msra.mxu0 0.0
        %1656 = vmatprep.subr.mxu0 0.0
        %1657 = vmatpush1.msra.mxu0 0.0
        %1658 = vmatprep.subr.mxu0 0.0
        %1659 = vmatpush1.msra.mxu0 0.0
        %1660 = vmatprep.subr.mxu0 0.0
        %1661 = vmatpush1.msra.mxu0 0.0
        %1662 = vmatprep.subr.mxu0 0.0
        %1663 = vmatpush1.msra.mxu0 0.0
        %1664 = vmatprep.subr.mxu0 0.0
        %1665 = vmatpush1.msra.mxu0 0.0
        %1666 = vmatprep.subr.mxu0 0.0
        %1667 = vmatpush1.msra.mxu0 0.0
        %1668 = vmatprep.subr.mxu0 0.0
        %1669 = vmatpush1.msra.mxu0 0.0
        %1670 = vmatprep.subr.mxu0 0.0
        %1671 = vmatpush1.msra.mxu0 0.0
        %1672 = vmatprep.subr.mxu0 0.0
        %1673 = vmatpush1.msra.mxu0 0.0
        %1674 = vmatprep.subr.mxu0 0.0
        %1675 = vmatpush1.msra.mxu0 0.0
        %1676 = vmatprep.subr.mxu0 0.0
        %1677 = vmatpush1.msra.mxu0 0.0
        %1678 = vmatprep.subr.mxu0 0.0
        %1679 = vmatpush1.msra.mxu0 0.0
        %1680 = vmatprep.subr.mxu0 %v423
        %1681 = vmatpush1.msra.mxu0 %v422
        %1682 = vmatprep.subr.mxu0 %v398
        %1683 = vmatpush1.msra.mxu0 %v397
        %1684 = vmatprep.subr.mxu0 %v373
        %1685 = vmatpush1.msra.mxu0 %v372
        %1686 = vmatprep.subr.mxu0 0.0
        %1687 = vmatpush2.msra.mxu0 0.0
        %1688 = vmatprep.subr.mxu0 0.0
        %1689 = vmatpush2.msra.mxu0 0.0
        %1690 = vmatprep.subr.mxu0 0.0
        %1691 = vmatpush2.msra.mxu0 0.0
        %1692 = vmatprep.subr.mxu0 0.0
        %1693 = vmatpush2.msra.mxu0 0.0
        %1694 = vmatprep.subr.mxu0 0.0
        %1695 = vmatpush2.msra.mxu0 0.0
        %1696 = vmatprep.subr.mxu0 0.0
        %1697 = vmatpush2.msra.mxu0 0.0
        %1698 = vmatprep.subr.mxu0 0.0
        %1699 = vmatpush2.msra.mxu0 0.0
        %1700 = vmatprep.subr.mxu0 0.0
        %1701 = vmatpush2.msra.mxu0 0.0
        %1702 = vmatprep.subr.mxu0 0.0
        %1703 = vmatpush2.msra.mxu0 0.0
        %1704 = vmatprep.subr.mxu0 0.0
        %1705 = vmatpush2.msra.mxu0 0.0
        %1706 = vmatprep.subr.mxu0 0.0
        %1707 = vmatpush2.msra.mxu0 0.0
        %1708 = vmatprep.subr.mxu0 0.0
        %1709 = vmatpush2.msra.mxu0 0.0
        %1710 = vmatprep.subr.mxu0 0.0
        %1711 = vmatpush2.msra.mxu0 0.0
        %1712 = vmatprep.subr.mxu0 0.0
        %1713 = vmatpush2.msra.mxu0 0.0
        %1714 = vmatprep.subr.mxu0 0.0
        %1715 = vmatpush2.msra.mxu0 0.0
        %1716 = vmatprep.subr.mxu0 0.0
        %1717 = vmatpush2.msra.mxu0 0.0
        %1718 = vmatprep.mubr.f32.mxu0 0.0
        %1719 = vmatmul.mubr.f32.gmra.mxu0 %v438
        %v1720 = vpop.f32.mrf.mxu0
        %v1721 = vadd.f32 0.0, %v1720
        %v1722 = vpop.f32.mrf.mxu0
        %v1723 = vadd.f32 0.0, %v1722
        %1724 = vmatprep.mubr.f32.mxu0 0.0
        %1725 = vmatmul.mubr.f32.gmra.mxu0 %v441
        %v1726 = vpop.f32.mrf.mxu0
        %v1727 = vadd.f32 0.0, %v1726
        %v1728 = vpop.f32.mrf.mxu0
        %v1729 = vadd.f32 0.0, %v1728
        %1730 = vmatprep.mubr.f32.mxu0 0.0
        %1731 = vmatmul.mubr.f32.gmra.mxu0 %v444
        %v1732 = vpop.f32.mrf.mxu0
        %v1733 = vadd.f32 0.0, %v1732
        %v1734 = vpop.f32.mrf.mxu0
        %v1735 = vadd.f32 0.0, %v1734
        %1736 = vmatprep.mubr.f32.mxu0 0.0
        %1737 = vmatmul.mubr.f32.gmra.mxu0 %v447
        %v1738 = vpop.f32.mrf.mxu0
        %v1739 = vadd.f32 0.0, %v1738
        %v1740 = vpop.f32.mrf.mxu0
        %v1741 = vadd.f32 0.0, %v1740
        %1742 = vmatprep.mubr.f32.mxu0 0.0
        %1743 = vmatmul.mubr.f32.gmra.mxu0 %v450
        %v1744 = vpop.f32.mrf.mxu0
        %v1745 = vadd.f32 0.0, %v1744
        %v1746 = vpop.f32.mrf.mxu0
        %v1747 = vadd.f32 0.0, %v1746
        %1748 = vmatprep.mubr.f32.mxu0 0.0
        %1749 = vmatmul.mubr.f32.gmra.mxu0 %v453
        %v1750 = vpop.f32.mrf.mxu0
        %v1751 = vadd.f32 0.0, %v1750
        %v1752 = vpop.f32.mrf.mxu0
        %v1753 = vadd.f32 0.0, %v1752
        %1754 = vmatprep.mubr.f32.mxu0 0.0
        %1755 = vmatmul.mubr.f32.gmra.mxu0 %v456
        %v1756 = vpop.f32.mrf.mxu0
        %v1757 = vadd.f32 0.0, %v1756
        %v1758 = vpop.f32.mrf.mxu0
        %v1759 = vadd.f32 0.0, %v1758
        %1760 = vmatprep.mubr.f32.mxu0 0.0
        %1761 = vmatmul.mubr.f32.gmra.mxu0 %v459
        %v1762 = vpop.f32.mrf.mxu0
        %v1763 = vadd.f32 0.0, %v1762
        %v1764 = vpop.f32.mrf.mxu0
        %v1765 = vadd.f32 0.0, %v1764
        %1766 = vmatprep.mubr.f32.mxu0 0.0
        %1767 = vmatmul.mubr.f32.gmra.mxu0 %v462
        %v1768 = vpop.f32.mrf.mxu0
        %v1769 = vadd.f32 0.0, %v1768
        %v1770 = vpop.f32.mrf.mxu0
        %v1771 = vadd.f32 0.0, %v1770
        %1772 = vdwg.mxu0
        %1773 = vmatprep.subr.mxu0 0.0
        %1774 = vmatpush1.msra.mxu0 0.0
        %1775 = vmatprep.subr.mxu0 0.0
        %1776 = vmatpush1.msra.mxu0 0.0
        %1777 = vmatprep.subr.mxu0 0.0
        %1778 = vmatpush1.msra.mxu0 0.0
        %1779 = vmatprep.subr.mxu0 0.0
        %1780 = vmatpush1.msra.mxu0 0.0
        %1781 = vmatprep.subr.mxu0 0.0
        %1782 = vmatpush1.msra.mxu0 0.0
        %1783 = vmatprep.subr.mxu0 0.0
        %1784 = vmatpush1.msra.mxu0 0.0
        %1785 = vmatprep.subr.mxu0 0.0
        %1786 = vmatpush1.msra.mxu0 0.0
        %1787 = vmatprep.subr.mxu0 0.0
        %1788 = vmatpush1.msra.mxu0 0.0
        %1789 = vmatprep.subr.mxu0 0.0
        %1790 = vmatpush1.msra.mxu0 0.0
        %1791 = vmatprep.subr.mxu0 0.0
        %1792 = vmatpush1.msra.mxu0 0.0
        %1793 = vmatprep.subr.mxu0 0.0
        %1794 = vmatpush1.msra.mxu0 0.0
        %1795 = vmatprep.subr.mxu0 0.0
        %1796 = vmatpush1.msra.mxu0 0.0
        %1797 = vmatprep.subr.mxu0 0.0
        %1798 = vmatpush1.msra.mxu0 0.0
        %1799 = vmatprep.subr.mxu0 %v425
        %1800 = vmatpush1.msra.mxu0 %v424
        %1801 = vmatprep.subr.mxu0 %v400
        %1802 = vmatpush1.msra.mxu0 %v399
        %1803 = vmatprep.subr.mxu0 %v375
        %1804 = vmatpush1.msra.mxu0 %v374
        %1805 = vmatprep.subr.mxu0 0.0
        %1806 = vmatpush2.msra.mxu0 0.0
        %1807 = vmatprep.subr.mxu0 0.0
        %1808 = vmatpush2.msra.mxu0 0.0
        %1809 = vmatprep.subr.mxu0 0.0
        %1810 = vmatpush2.msra.mxu0 0.0
        %1811 = vmatprep.subr.mxu0 0.0
        %1812 = vmatpush2.msra.mxu0 0.0
        %1813 = vmatprep.subr.mxu0 0.0
        %1814 = vmatpush2.msra.mxu0 0.0
        %1815 = vmatprep.subr.mxu0 0.0
        %1816 = vmatpush2.msra.mxu0 0.0
        %1817 = vmatprep.subr.mxu0 0.0
        %1818 = vmatpush2.msra.mxu0 0.0
        %1819 = vmatprep.subr.mxu0 0.0
        %1820 = vmatpush2.msra.mxu0 0.0
        %1821 = vmatprep.subr.mxu0 0.0
        %1822 = vmatpush2.msra.mxu0 0.0
        %1823 = vmatprep.subr.mxu0 0.0
        %1824 = vmatpush2.msra.mxu0 0.0
        %1825 = vmatprep.subr.mxu0 0.0
        %1826 = vmatpush2.msra.mxu0 0.0
        %1827 = vmatprep.subr.mxu0 0.0
        %1828 = vmatpush2.msra.mxu0 0.0
        %1829 = vmatprep.subr.mxu0 0.0
        %1830 = vmatpush2.msra.mxu0 0.0
        %1831 = vmatprep.subr.mxu0 0.0
        %1832 = vmatpush2.msra.mxu0 0.0
        %1833 = vmatprep.subr.mxu0 0.0
        %1834 = vmatpush2.msra.mxu0 0.0
        %1835 = vmatprep.subr.mxu0 0.0
        %1836 = vmatpush2.msra.mxu0 0.0
        %1837 = vmatprep.mubr.f32.mxu0 0.0
        %1838 = vmatmul.mubr.f32.gmra.mxu0 %v438
        %v1839 = vpop.f32.mrf.mxu0
        %v1840 = vadd.f32 0.0, %v1839
        %v1841 = vpop.f32.mrf.mxu0
        %v1842 = vadd.f32 0.0, %v1841
        %1843 = vmatprep.mubr.f32.mxu0 0.0
        %1844 = vmatmul.mubr.f32.gmra.mxu0 %v441
        %v1845 = vpop.f32.mrf.mxu0
        %v1846 = vadd.f32 0.0, %v1845
        %v1847 = vpop.f32.mrf.mxu0
        %v1848 = vadd.f32 0.0, %v1847
        %1849 = vmatprep.mubr.f32.mxu0 0.0
        %1850 = vmatmul.mubr.f32.gmra.mxu0 %v444
        %v1851 = vpop.f32.mrf.mxu0
        %v1852 = vadd.f32 0.0, %v1851
        %v1853 = vpop.f32.mrf.mxu0
        %v1854 = vadd.f32 0.0, %v1853
        %1855 = vmatprep.mubr.f32.mxu0 0.0
        %1856 = vmatmul.mubr.f32.gmra.mxu0 %v447
        %v1857 = vpop.f32.mrf.mxu0
        %v1858 = vadd.f32 0.0, %v1857
        %v1859 = vpop.f32.mrf.mxu0
        %v1860 = vadd.f32 0.0, %v1859
        %1861 = vmatprep.mubr.f32.mxu0 0.0
        %1862 = vmatmul.mubr.f32.gmra.mxu0 %v450
        %v1863 = vpop.f32.mrf.mxu0
        %v1864 = vadd.f32 0.0, %v1863
        %v1865 = vpop.f32.mrf.mxu0
        %v1866 = vadd.f32 0.0, %v1865
        %1867 = vmatprep.mubr.f32.mxu0 0.0
        %1868 = vmatmul.mubr.f32.gmra.mxu0 %v453
        %v1869 = vpop.f32.mrf.mxu0
        %v1870 = vadd.f32 0.0, %v1869
        %v1871 = vpop.f32.mrf.mxu0
        %v1872 = vadd.f32 0.0, %v1871
        %1873 = vmatprep.mubr.f32.mxu0 0.0
        %1874 = vmatmul.mubr.f32.gmra.mxu0 %v456
        %v1875 = vpop.f32.mrf.mxu0
        %v1876 = vadd.f32 0.0, %v1875
        %v1877 = vpop.f32.mrf.mxu0
        %v1878 = vadd.f32 0.0, %v1877
        %1879 = vmatprep.mubr.f32.mxu0 0.0
        %1880 = vmatmul.mubr.f32.gmra.mxu0 %v459
        %v1881 = vpop.f32.mrf.mxu0
        %v1882 = vadd.f32 0.0, %v1881
        %v1883 = vpop.f32.mrf.mxu0
        %v1884 = vadd.f32 0.0, %v1883
        %1885 = vmatprep.mubr.f32.mxu0 0.0
        %1886 = vmatmul.mubr.f32.gmra.mxu0 %v462
        %v1887 = vpop.f32.mrf.mxu0
        %v1888 = vadd.f32 0.0, %v1887
        %v1889 = vpop.f32.mrf.mxu0
        %v1890 = vadd.f32 0.0, %v1889
        %1891 = vdwg.mxu0
        %1892 = vmatprep.subr.mxu0 0.0
        %1893 = vmatpush1.msra.mxu0 0.0
        %1894 = vmatprep.subr.mxu0 0.0
        %1895 = vmatpush1.msra.mxu0 0.0
        %1896 = vmatprep.subr.mxu0 0.0
        %1897 = vmatpush1.msra.mxu0 0.0
        %1898 = vmatprep.subr.mxu0 0.0
        %1899 = vmatpush1.msra.mxu0 0.0
        %1900 = vmatprep.subr.mxu0 0.0
        %1901 = vmatpush1.msra.mxu0 0.0
        %1902 = vmatprep.subr.mxu0 0.0
        %1903 = vmatpush1.msra.mxu0 0.0
        %1904 = vmatprep.subr.mxu0 0.0
        %1905 = vmatpush1.msra.mxu0 0.0
        %1906 = vmatprep.subr.mxu0 0.0
        %1907 = vmatpush1.msra.mxu0 0.0
        %1908 = vmatprep.subr.mxu0 0.0
        %1909 = vmatpush1.msra.mxu0 0.0
        %1910 = vmatprep.subr.mxu0 0.0
        %1911 = vmatpush1.msra.mxu0 0.0
        %1912 = vmatprep.subr.mxu0 0.0
        %1913 = vmatpush1.msra.mxu0 0.0
        %1914 = vmatprep.subr.mxu0 0.0
        %1915 = vmatpush1.msra.mxu0 0.0
        %1916 = vmatprep.subr.mxu0 0.0
        %1917 = vmatpush1.msra.mxu0 0.0
        %1918 = vmatprep.subr.mxu0 0.0
        %1919 = vmatpush1.msra.mxu0 %v426
        %1920 = vmatprep.subr.mxu0 0.0
        %1921 = vmatpush1.msra.mxu0 %v401
        %1922 = vmatprep.subr.mxu0 0.0
        %1923 = vmatpush1.msra.mxu0 %v376
        %1924 = vmatprep.subr.mxu0 0.0
        %1925 = vmatpush2.msra.mxu0 0.0
        %1926 = vmatprep.subr.mxu0 0.0
        %1927 = vmatpush2.msra.mxu0 0.0
        %1928 = vmatprep.subr.mxu0 0.0
        %1929 = vmatpush2.msra.mxu0 0.0
        %1930 = vmatprep.subr.mxu0 0.0
        %1931 = vmatpush2.msra.mxu0 0.0
        %1932 = vmatprep.subr.mxu0 0.0
        %1933 = vmatpush2.msra.mxu0 0.0
        %1934 = vmatprep.subr.mxu0 0.0
        %1935 = vmatpush2.msra.mxu0 0.0
        %1936 = vmatprep.subr.mxu0 0.0
        %1937 = vmatpush2.msra.mxu0 0.0
        %1938 = vmatprep.subr.mxu0 0.0
        %1939 = vmatpush2.msra.mxu0 0.0
        %1940 = vmatprep.subr.mxu0 0.0
        %1941 = vmatpush2.msra.mxu0 0.0
        %1942 = vmatprep.subr.mxu0 0.0
        %1943 = vmatpush2.msra.mxu0 0.0
        %1944 = vmatprep.subr.mxu0 0.0
        %1945 = vmatpush2.msra.mxu0 0.0
        %1946 = vmatprep.subr.mxu0 0.0
        %1947 = vmatpush2.msra.mxu0 0.0
        %1948 = vmatprep.subr.mxu0 0.0
        %1949 = vmatpush2.msra.mxu0 0.0
        %1950 = vmatprep.subr.mxu0 0.0
        %1951 = vmatpush2.msra.mxu0 0.0
        %1952 = vmatprep.subr.mxu0 0.0
        %1953 = vmatpush2.msra.mxu0 0.0
        %1954 = vmatprep.subr.mxu0 0.0
        %1955 = vmatpush2.msra.mxu0 0.0
        %1956 = vmatprep.mubr.f32.mxu0 0.0
        %1957 = vmatmul.mubr.f32.gmra.mxu0 %v438
        %v1958 = vpop.f32.mrf.mxu0
        %v1959 = vadd.f32 0.0, %v1958
        %v1960 = vpop.f32.mrf.mxu0
        %1961 = vmatprep.mubr.f32.mxu0 0.0
        %1962 = vmatmul.mubr.f32.gmra.mxu0 %v441
        %v1963 = vpop.f32.mrf.mxu0
        %v1964 = vadd.f32 0.0, %v1963
        %v1965 = vpop.f32.mrf.mxu0
        %1966 = vmatprep.mubr.f32.mxu0 0.0
        %1967 = vmatmul.mubr.f32.gmra.mxu0 %v444
        %v1968 = vpop.f32.mrf.mxu0
        %v1969 = vadd.f32 0.0, %v1968
        %v1970 = vpop.f32.mrf.mxu0
        %1971 = vmatprep.mubr.f32.mxu0 0.0
        %1972 = vmatmul.mubr.f32.gmra.mxu0 %v447
        %v1973 = vpop.f32.mrf.mxu0
        %v1974 = vadd.f32 0.0, %v1973
        %v1975 = vpop.f32.mrf.mxu0
        %1976 = vmatprep.mubr.f32.mxu0 0.0
        %1977 = vmatmul.mubr.f32.gmra.mxu0 %v450
        %v1978 = vpop.f32.mrf.mxu0
        %v1979 = vadd.f32 0.0, %v1978
        %v1980 = vpop.f32.mrf.mxu0
        %1981 = vmatprep.mubr.f32.mxu0 0.0
        %1982 = vmatmul.mubr.f32.gmra.mxu0 %v453
        %v1983 = vpop.f32.mrf.mxu0
        %v1984 = vadd.f32 0.0, %v1983
        %v1985 = vpop.f32.mrf.mxu0
        %1986 = vmatprep.mubr.f32.mxu0 0.0
        %1987 = vmatmul.mubr.f32.gmra.mxu0 %v456
        %v1988 = vpop.f32.mrf.mxu0
        %v1989 = vadd.f32 0.0, %v1988
        %v1990 = vpop.f32.mrf.mxu0
        %1991 = vmatprep.mubr.f32.mxu0 0.0
        %1992 = vmatmul.mubr.f32.gmra.mxu0 %v459
        %v1993 = vpop.f32.mrf.mxu0
        %v1994 = vadd.f32 0.0, %v1993
        %v1995 = vpop.f32.mrf.mxu0
        %1996 = vmatprep.mubr.f32.mxu0 0.0
        %1997 = vmatmul.mubr.f32.gmra.mxu0 %v462
        %v1998 = vpop.f32.mrf.mxu0
        %v1999 = vadd.f32 0.0, %v1998
        %v2000 = vpop.f32.mrf.mxu0
        %2001 = vdwg.mxu0
        %2002 = vst [vmem:[%s194] sm:$0xff] %v531
        %2003 = vst [vmem:[%s194 + $0x8] sm:$0xff] %v533
        %2004 = vst [vmem:[%s194 + $0x10] sm:$0xff] %v650
        %2005 = vst [vmem:[%s194 + $0x18] sm:$0xff] %v652
        %2006 = vst [vmem:[%s194 + $0x20] sm:$0xff] %v769
        %2007 = vst [vmem:[%s194 + $0x28] sm:$0xff] %v771
        %2008 = vst [vmem:[%s194 + $0x30] sm:$0xff] %v888
        %2009 = vst [vmem:[%s194 + $0x38] sm:$0xff] %v890
        %2010 = vst [vmem:[%s194 + $0x40] sm:$0xff] %v1007
        %2011 = vst [vmem:[%s194 + $0x48] sm:$0xff] %v1009
        %2012 = vst [vmem:[%s194 + $0x50] sm:$0xff] %v1126
        %2013 = vst [vmem:[%s194 + $0x58] sm:$0xff] %v1128
        %2014 = vst [vmem:[%s194 + $0x60] sm:$0xff] %v1245
        %2015 = vst [vmem:[%s194 + $0x68] sm:$0xff] %v1247
        %2016 = vst [vmem:[%s194 + $0x70] sm:$0xff] %v1364
        %2017 = vst [vmem:[%s194 + $0x78] sm:$0xff] %v1366
        %2018 = vst [vmem:[%s194 + $0x80] sm:$0xff] %v1483
        %2019 = vst [vmem:[%s194 + $0x88] sm:$0xff] %v1485
        %2020 = vst [vmem:[%s194 + $0x90] sm:$0xff] %v1602
        %2021 = vst [vmem:[%s194 + $0x98] sm:$0xff] %v1604
        %2022 = vst [vmem:[%s194 + $0xa0] sm:$0xff] %v1721
        %2023 = vst [vmem:[%s194 + $0xa8] sm:$0xff] %v1723
        %2024 = vst [vmem:[%s194 + $0xb0] sm:$0xff] %v1840
        %2025 = vst [vmem:[%s194 + $0xb8] sm:$0xff] %v1842
        %vm2026 = vcmask 523264
        %2027 = vst.msk [vmem:[%s194 + $0xc0] sm:$0xff] %vm2026, %v1959
        %2028 = vst [vmem:[%s194 + $0xc8] sm:$0xff] %v537
        %2029 = vst [vmem:[%s194 + $0xd0] sm:$0xff] %v539
        %2030 = vst [vmem:[%s194 + $0xd8] sm:$0xff] %v656
        %2031 = vst [vmem:[%s194 + $0xe0] sm:$0xff] %v658
        %2032 = vst [vmem:[%s194 + $0xe8] sm:$0xff] %v775
        %2033 = vst [vmem:[%s194 + $0xf0] sm:$0xff] %v777
        %2034 = vst [vmem:[%s194 + $0xf8] sm:$0xff] %v894
        %2035 = vst [vmem:[%s194 + $0x100] sm:$0xff] %v896
        %2036 = vst [vmem:[%s194 + $0x108] sm:$0xff] %v1013
        %2037 = vst [vmem:[%s194 + $0x110] sm:$0xff] %v1015
        %2038 = vst [vmem:[%s194 + $0x118] sm:$0xff] %v1132
        %2039 = vst [vmem:[%s194 + $0x120] sm:$0xff] %v1134
        %2040 = vst [vmem:[%s194 + $0x128] sm:$0xff] %v1251
        %2041 = vst [vmem:[%s194 + $0x130] sm:$0xff] %v1253
        %2042 = vst [vmem:[%s194 + $0x138] sm:$0xff] %v1370
        %2043 = vst [vmem:[%s194 + $0x140] sm:$0xff] %v1372
        %2044 = vst [vmem:[%s194 + $0x148] sm:$0xff] %v1489
        %2045 = vst [vmem:[%s194 + $0x150] sm:$0xff] %v1491
        %2046 = vst [vmem:[%s194 + $0x158] sm:$0xff] %v1608
        %2047 = vst [vmem:[%s194 + $0x160] sm:$0xff] %v1610
        %2048 = vst [vmem:[%s194 + $0x168] sm:$0xff] %v1727
        %2049 = vst [vmem:[%s194 + $0x170] sm:$0xff] %v1729
        %2050 = vst [vmem:[%s194 + $0x178] sm:$0xff] %v1846
        %2051 = vst [vmem:[%s194 + $0x180] sm:$0xff] %v1848
        %2052 = vst.msk [vmem:[%s194 + $0x188] sm:$0xff] %vm2026, %v1964
        %2053 = vst [vmem:[%s194 + $0x190] sm:$0xff] %v543
        %2054 = vst [vmem:[%s194 + $0x198] sm:$0xff] %v545
        %2055 = vst [vmem:[%s194 + $0x1a0] sm:$0xff] %v662
        %2056 = vst [vmem:[%s194 + $0x1a8] sm:$0xff] %v664
        %2057 = vst [vmem:[%s194 + $0x1b0] sm:$0xff] %v781
        %2058 = vst [vmem:[%s194 + $0x1b8] sm:$0xff] %v783
        %2059 = vst [vmem:[%s194 + $0x1c0] sm:$0xff] %v900
        %2060 = vst [vmem:[%s194 + $0x1c8] sm:$0xff] %v902
        %2061 = vst [vmem:[%s194 + $0x1d0] sm:$0xff] %v1019
        %2062 = vst [vmem:[%s194 + $0x1d8] sm:$0xff] %v1021
        %2063 = vst [vmem:[%s194 + $0x1e0] sm:$0xff] %v1138
        %2064 = vst [vmem:[%s194 + $0x1e8] sm:$0xff] %v1140
        %2065 = vst [vmem:[%s194 + $0x1f0] sm:$0xff] %v1257
        %2066 = vst [vmem:[%s194 + $0x1f8] sm:$0xff] %v1259
        %2067 = vst [vmem:[%s194 + $0x200] sm:$0xff] %v1376
        %2068 = vst [vmem:[%s194 + $0x208] sm:$0xff] %v1378
        %2069 = vst [vmem:[%s194 + $0x210] sm:$0xff] %v1495
        %2070 = vst [vmem:[%s194 + $0x218] sm:$0xff] %v1497
        %2071 = vst [vmem:[%s194 + $0x220] sm:$0xff] %v1614
        %2072 = vst [vmem:[%s194 + $0x228] sm:$0xff] %v1616
        %2073 = vst [vmem:[%s194 + $0x230] sm:$0xff] %v1733
        %2074 = vst [vmem:[%s194 + $0x238] sm:$0xff] %v1735
        %2075 = vst [vmem:[%s194 + $0x240] sm:$0xff] %v1852
        %2076 = vst [vmem:[%s194 + $0x248] sm:$0xff] %v1854
        %2077 = vst.msk [vmem:[%s194 + $0x250] sm:$0xff] %vm2026, %v1969
        %2078 = vst [vmem:[%s194 + $0x258] sm:$0xff] %v549
        %2079 = vst [vmem:[%s194 + $0x260] sm:$0xff] %v551
        %2080 = vst [vmem:[%s194 + $0x268] sm:$0xff] %v668
        %2081 = vst [vmem:[%s194 + $0x270] sm:$0xff] %v670
        %2082 = vst [vmem:[%s194 + $0x278] sm:$0xff] %v787
        %2083 = vst [vmem:[%s194 + $0x280] sm:$0xff] %v789
        %2084 = vst [vmem:[%s194 + $0x288] sm:$0xff] %v906
        %2085 = vst [vmem:[%s194 + $0x290] sm:$0xff] %v908
        %2086 = vst [vmem:[%s194 + $0x298] sm:$0xff] %v1025
        %2087 = vst [vmem:[%s194 + $0x2a0] sm:$0xff] %v1027
        %2088 = vst [vmem:[%s194 + $0x2a8] sm:$0xff] %v1144
        %2089 = vst [vmem:[%s194 + $0x2b0] sm:$0xff] %v1146
        %2090 = vst [vmem:[%s194 + $0x2b8] sm:$0xff] %v1263
        %2091 = vst [vmem:[%s194 + $0x2c0] sm:$0xff] %v1265
        %2092 = vst [vmem:[%s194 + $0x2c8] sm:$0xff] %v1382
        %2093 = vst [vmem:[%s194 + $0x2d0] sm:$0xff] %v1384
        %2094 = vst [vmem:[%s194 + $0x2d8] sm:$0xff] %v1501
        %2095 = vst [vmem:[%s194 + $0x2e0] sm:$0xff] %v1503
        %2096 = vst [vmem:[%s194 + $0x2e8] sm:$0xff] %v1620
        %2097 = vst [vmem:[%s194 + $0x2f0] sm:$0xff] %v1622
        %2098 = vst [vmem:[%s194 + $0x2f8] sm:$0xff] %v1739
        %2099 = vst [vmem:[%s194 + $0x300] sm:$0xff] %v1741
        %2100 = vst [vmem:[%s194 + $0x308] sm:$0xff] %v1858
        %2101 = vst [vmem:[%s194 + $0x310] sm:$0xff] %v1860
        %2102 = vst.msk [vmem:[%s194 + $0x318] sm:$0xff] %vm2026, %v1974
        %2103 = vst [vmem:[%s194 + $0x320] sm:$0xff] %v555
        %2104 = vst [vmem:[%s194 + $0x328] sm:$0xff] %v557
        %2105 = vst [vmem:[%s194 + $0x330] sm:$0xff] %v674
        %2106 = vst [vmem:[%s194 + $0x338] sm:$0xff] %v676
        %2107 = vst [vmem:[%s194 + $0x340] sm:$0xff] %v793
        %2108 = vst [vmem:[%s194 + $0x348] sm:$0xff] %v795
        %2109 = vst [vmem:[%s194 + $0x350] sm:$0xff] %v912
        %2110 = vst [vmem:[%s194 + $0x358] sm:$0xff] %v914
        %2111 = vst [vmem:[%s194 + $0x360] sm:$0xff] %v1031
        %2112 = vst [vmem:[%s194 + $0x368] sm:$0xff] %v1033
        %2113 = vst [vmem:[%s194 + $0x370] sm:$0xff] %v1150
        %2114 = vst [vmem:[%s194 + $0x378] sm:$0xff] %v1152
        %2115 = vst [vmem:[%s194 + $0x380] sm:$0xff] %v1269
        %2116 = vst [vmem:[%s194 + $0x388] sm:$0xff] %v1271
        %2117 = vst [vmem:[%s194 + $0x390] sm:$0xff] %v1388
        %2118 = vst [vmem:[%s194 + $0x398] sm:$0xff] %v1390
        %2119 = vst [vmem:[%s194 + $0x3a0] sm:$0xff] %v1507
        %2120 = vst [vmem:[%s194 + $0x3a8] sm:$0xff] %v1509
        %2121 = vst [vmem:[%s194 + $0x3b0] sm:$0xff] %v1626
        %2122 = vst [vmem:[%s194 + $0x3b8] sm:$0xff] %v1628
        %2123 = vst [vmem:[%s194 + $0x3c0] sm:$0xff] %v1745
        %2124 = vst [vmem:[%s194 + $0x3c8] sm:$0xff] %v1747
        %2125 = vst [vmem:[%s194 + $0x3d0] sm:$0xff] %v1864
        %2126 = vst [vmem:[%s194 + $0x3d8] sm:$0xff] %v1866
        %2127 = vst.msk [vmem:[%s194 + $0x3e0] sm:$0xff] %vm2026, %v1979
        %2128 = vst [vmem:[%s194 + $0x3e8] sm:$0xff] %v561
        %2129 = vst [vmem:[%s194 + $0x3f0] sm:$0xff] %v563
        %2130 = vst [vmem:[%s194 + $0x3f8] sm:$0xff] %v680
        %2131 = vst [vmem:[%s194 + $0x400] sm:$0xff] %v682
        %2132 = vst [vmem:[%s194 + $0x408] sm:$0xff] %v799
        %2133 = vst [vmem:[%s194 + $0x410] sm:$0xff] %v801
        %2134 = vst [vmem:[%s194 + $0x418] sm:$0xff] %v918
        %2135 = vst [vmem:[%s194 + $0x420] sm:$0xff] %v920
        %2136 = vst [vmem:[%s194 + $0x428] sm:$0xff] %v1037
        %2137 = vst [vmem:[%s194 + $0x430] sm:$0xff] %v1039
        %2138 = vst [vmem:[%s194 + $0x438] sm:$0xff] %v1156
        %2139 = vst [vmem:[%s194 + $0x440] sm:$0xff] %v1158
        %2140 = vst [vmem:[%s194 + $0x448] sm:$0xff] %v1275
        %2141 = vst [vmem:[%s194 + $0x450] sm:$0xff] %v1277
        %2142 = vst [vmem:[%s194 + $0x458] sm:$0xff] %v1394
        %2143 = vst [vmem:[%s194 + $0x460] sm:$0xff] %v1396
        %2144 = vst [vmem:[%s194 + $0x468] sm:$0xff] %v1513
        %2145 = vst [vmem:[%s194 + $0x470] sm:$0xff] %v1515
        %2146 = vst [vmem:[%s194 + $0x478] sm:$0xff] %v1632
        %2147 = vst [vmem:[%s194 + $0x480] sm:$0xff] %v1634
        %2148 = vst [vmem:[%s194 + $0x488] sm:$0xff] %v1751
        %2149 = vst [vmem:[%s194 + $0x490] sm:$0xff] %v1753
        %2150 = vst [vmem:[%s194 + $0x498] sm:$0xff] %v1870
        %2151 = vst [vmem:[%s194 + $0x4a0] sm:$0xff] %v1872
        %2152 = vst.msk [vmem:[%s194 + $0x4a8] sm:$0xff] %vm2026, %v1984
        %2153 = vst [vmem:[%s194 + $0x4b0] sm:$0xff] %v567
        %2154 = vst [vmem:[%s194 + $0x4b8] sm:$0xff] %v569
        %2155 = vst [vmem:[%s194 + $0x4c0] sm:$0xff] %v686
        %2156 = vst [vmem:[%s194 + $0x4c8] sm:$0xff] %v688
        %2157 = vst [vmem:[%s194 + $0x4d0] sm:$0xff] %v805
        %2158 = vst [vmem:[%s194 + $0x4d8] sm:$0xff] %v807
        %2159 = vst [vmem:[%s194 + $0x4e0] sm:$0xff] %v924
        %2160 = vst [vmem:[%s194 + $0x4e8] sm:$0xff] %v926
        %2161 = vst [vmem:[%s194 + $0x4f0] sm:$0xff] %v1043
        %2162 = vst [vmem:[%s194 + $0x4f8] sm:$0xff] %v1045
        %2163 = vst [vmem:[%s194 + $0x500] sm:$0xff] %v1162
        %2164 = vst [vmem:[%s194 + $0x508] sm:$0xff] %v1164
        %2165 = vst [vmem:[%s194 + $0x510] sm:$0xff] %v1281
        %2166 = vst [vmem:[%s194 + $0x518] sm:$0xff] %v1283
        %2167 = vst [vmem:[%s194 + $0x520] sm:$0xff] %v1400
        %2168 = vst [vmem:[%s194 + $0x528] sm:$0xff] %v1402
        %2169 = vst [vmem:[%s194 + $0x530] sm:$0xff] %v1519
        %2170 = vst [vmem:[%s194 + $0x538] sm:$0xff] %v1521
        %2171 = vst [vmem:[%s194 + $0x540] sm:$0xff] %v1638
        %2172 = vst [vmem:[%s194 + $0x548] sm:$0xff] %v1640
        %2173 = vst [vmem:[%s194 + $0x550] sm:$0xff] %v1757
        %2174 = vst [vmem:[%s194 + $0x558] sm:$0xff] %v1759
        %2175 = vst [vmem:[%s194 + $0x560] sm:$0xff] %v1876
        %2176 = vst [vmem:[%s194 + $0x568] sm:$0xff] %v1878
        %2177 = vst.msk [vmem:[%s194 + $0x570] sm:$0xff] %vm2026, %v1989
        %2178 = vst [vmem:[%s194 + $0x578] sm:$0xff] %v573
        %2179 = vst [vmem:[%s194 + $0x580] sm:$0xff] %v575
        %2180 = vst [vmem:[%s194 + $0x588] sm:$0xff] %v692
        %2181 = vst [vmem:[%s194 + $0x590] sm:$0xff] %v694
        %2182 = vst [vmem:[%s194 + $0x598] sm:$0xff] %v811
        %2183 = vst [vmem:[%s194 + $0x5a0] sm:$0xff] %v813
        %2184 = vst [vmem:[%s194 + $0x5a8] sm:$0xff] %v930
        %2185 = vst [vmem:[%s194 + $0x5b0] sm:$0xff] %v932
        %2186 = vst [vmem:[%s194 + $0x5b8] sm:$0xff] %v1049
        %2187 = vst [vmem:[%s194 + $0x5c0] sm:$0xff] %v1051
        %2188 = vst [vmem:[%s194 + $0x5c8] sm:$0xff] %v1168
        %2189 = vst [vmem:[%s194 + $0x5d0] sm:$0xff] %v1170
        %2190 = vst [vmem:[%s194 + $0x5d8] sm:$0xff] %v1287
        %2191 = vst [vmem:[%s194 + $0x5e0] sm:$0xff] %v1289
        %2192 = vst [vmem:[%s194 + $0x5e8] sm:$0xff] %v1406
        %2193 = vst [vmem:[%s194 + $0x5f0] sm:$0xff] %v1408
        %2194 = vst [vmem:[%s194 + $0x5f8] sm:$0xff] %v1525
        %2195 = vst [vmem:[%s194 + $0x600] sm:$0xff] %v1527
        %2196 = vst [vmem:[%s194 + $0x608] sm:$0xff] %v1644
        %2197 = vst [vmem:[%s194 + $0x610] sm:$0xff] %v1646
        %2198 = vst [vmem:[%s194 + $0x618] sm:$0xff] %v1763
        %2199 = vst [vmem:[%s194 + $0x620] sm:$0xff] %v1765
        %2200 = vst [vmem:[%s194 + $0x628] sm:$0xff] %v1882
        %2201 = vst [vmem:[%s194 + $0x630] sm:$0xff] %v1884
        %2202 = vst.msk [vmem:[%s194 + $0x638] sm:$0xff] %vm2026, %v1994
        %2203 = vst [vmem:[%s194 + $0x640] sm:$0xff] %v579
        %2204 = vst [vmem:[%s194 + $0x648] sm:$0xff] %v581
        %2205 = vst [vmem:[%s194 + $0x650] sm:$0xff] %v698
        %2206 = vst [vmem:[%s194 + $0x658] sm:$0xff] %v700
        %2207 = vst [vmem:[%s194 + $0x660] sm:$0xff] %v817
        %2208 = vst [vmem:[%s194 + $0x668] sm:$0xff] %v819
        %2209 = vst [vmem:[%s194 + $0x670] sm:$0xff] %v936
        %2210 = vst [vmem:[%s194 + $0x678] sm:$0xff] %v938
        %2211 = vst [vmem:[%s194 + $0x680] sm:$0xff] %v1055
        %2212 = vst [vmem:[%s194 + $0x688] sm:$0xff] %v1057
        %2213 = vst [vmem:[%s194 + $0x690] sm:$0xff] %v1174
        %2214 = vst [vmem:[%s194 + $0x698] sm:$0xff] %v1176
        %2215 = vst [vmem:[%s194 + $0x6a0] sm:$0xff] %v1293
        %2216 = vst [vmem:[%s194 + $0x6a8] sm:$0xff] %v1295
        %2217 = vst [vmem:[%s194 + $0x6b0] sm:$0xff] %v1412
        %2218 = vst [vmem:[%s194 + $0x6b8] sm:$0xff] %v1414
        %2219 = vst [vmem:[%s194 + $0x6c0] sm:$0xff] %v1531
        %2220 = vst [vmem:[%s194 + $0x6c8] sm:$0xff] %v1533
        %2221 = vst [vmem:[%s194 + $0x6d0] sm:$0xff] %v1650
        %2222 = vst [vmem:[%s194 + $0x6d8] sm:$0xff] %v1652
        %2223 = vst [vmem:[%s194 + $0x6e0] sm:$0xff] %v1769
        %2224 = vst [vmem:[%s194 + $0x6e8] sm:$0xff] %v1771
        %2225 = vst [vmem:[%s194 + $0x6f0] sm:$0xff] %v1888
        %2226 = vst [vmem:[%s194 + $0x6f8] sm:$0xff] %v1890
        %2227 = vst.msk [vmem:[%s194 + $0x700] sm:$0xff] %vm2026, %v1999
        %s2228 = sand.u32 %s95, 1
        %s2229 = scalar_lea.sflag [#allocation4], %s2228
        %s2230 = sand.u32 %s95, 1
        %s2231 = smul.addr %s2230, 1800
        %s2232 = scalar_lea.vmem [#allocation7], %s2231
        // Predicated region
        $region41: #{tpu_custom_call.1} parent=31 // pred_check
          %p2233 = pneg %p105
        $region42: #{tpu_custom_call.1} parent=31 // pred_check_branch
          %2235 = sbr.rel (%p2233) target = $region44
        $region43: #{tpu_custom_call.1} parent=31 // pred_region
          %s2236 = smul.u32 9, %s19
          %s2238 = ssub.s32 28800, 28800
          %2239 = vsyncadd %s2229, %s2238
          %s2240 = smul.addr %s2236, 25
          %s2241 = smul.addr %s2240, 128
          %s2242 = scalar_lea.hbm %s3, %s2241
          %s2243 = sshll.u32 %s2232, 4
          %s2244 = int_to_ptr.vmem [resolvable:$true] %s2243
          %2249 = dma.vmem_to_hbm [thread:$0]  %s2244, 28800, %s2242, %s2229, 3200, 3200, 200
        $region44: #{tpu_custom_call.1} parent=31 // pred_fallthru
          _
      $region32: #{tpu_custom_call.1} parent=5 // pred_fallthru
        _
      %p2250 = scmp.le.s32.totalorder 2, %s14
      // Predicated region
      $region45: #{tpu_custom_call.1} parent=5 // pred_check
        %p2251 = pneg %p2250
      $region46: #{tpu_custom_call.1} parent=5 // pred_check_branch
        %2253 = sbr.rel (%p2251) target = $region48
      $region47: #{tpu_custom_call.1} parent=5 // pred_region
        %s2254 = ssub.s32 %s14, 2
        // Predicated region
        $region49: #{tpu_custom_call.1} parent=47 // pred_check
          %p2255 = pneg %p111
        $region50: #{tpu_custom_call.1} parent=47 // pred_check_branch
          %2257 = sbr.rel (%p2255) target = $region52
        $region51: #{tpu_custom_call.1} parent=47 // pred_region
          %s2258 = sand.u32 %s96, 1
          %s2259 = scalar_lea.sflag [#allocation4], %s2258
          %s2260 = sand.u32 %s96, 1
          %s2261 = smul.addr %s2260, 1800
          %s2262 = scalar_lea.vmem [#allocation7], %s2261
          %2263 = dma.done %s2259, 28800
        $region52: #{tpu_custom_call.1} parent=47 // pred_fallthru
          _
      $region48: #{tpu_custom_call.1} parent=5 // pred_fallthru
        _
    $region6: #{tpu_custom_call.1} parent=1 // loop_footer
      %s18 = sadd.s32 1, %s14
    $region7: #{tpu_custom_call.1} parent=1 // loop_footer_branch
      %13 = sbr.rel target = $region3
    $region8: #{tpu_custom_call.1} parent=1 // loop_exit
      _
    %2264 = vsyncpa [#allocation3], 1
    %s2265 = scalar_lea.sflag [#allocation3], 1
    %2266 = vsyncpa %s2265, 1
    %2267 = vsyncpa [#allocation6], 1
    %2268 = vsyncpa [#allocation4], 1
    %s2269 = scalar_lea.sflag [#allocation4], 1
    %2270 = vsyncpa %s2269, 1

</llo_original>
